<compile_context>
chip_gen: v5e
topology: v5e:2x2
jax: 0.10.0
libtpu: 0.0.40
codegen_flags: <defaults>
</compile_context>

<pallas_src>
import functools

import jax
import jax.numpy as jnp
from jax import lax
from jax.experimental import pallas as pl
from jax.experimental.pallas import tpu as pltpu

HIDE_EMOTION_LABELS = ['no emotion', 'anger', 'Care', 'fear', 'anxiety', 'sadness',
                       'craving', 'anticipation', 'pleasure', 'satisfaction']
OUTPUT_DIM = len(HIDE_EMOTION_LABELS)   # 10

LN_EPS = 1e-5
LANE = 128
SUBLANE = 8
# PyTorch LSTM gate order is (i, f, g, o); kernel uses (i, f, o, g) so a single fused
# sigmoid covers gates[:, :3*Hpad] and a single tanh covers gates[:, 3*Hpad:].
GATE_PERM = (0, 1, 3, 2)


def _round_up(x, m):
    return (x + m - 1) // m * m


def _sigmoid(x):
    # one EUP push (tanh) instead of exp + reciprocal
    return 0.5 * (jnp.tanh(0.5 * x) + 1.0)


def sentiment_kernel(emb_ref,    # (TB, BB, Epad)       bf16 embedded chunk, time-major
                     wih_ref,    # (Epad, 4*Hpad)       bf16 W_ih^T (gate-padded, reordered)
                     whh_ref,    # (Hpad, 4*Hpad)       bf16 W_hh^T (gate-padded, reordered)
                     b_ref,      # (1, 4*Hpad)   f32    b_ih + b_hh (gate-padded, reordered)
                     len_ref,    # (BB, Hpad)    int32  per-row seq length (lane-broadcast)
                     fin_ref,    # (BB, Hpad)    f32    1.0 iff length[b] == max(lengths)
                     gamma_ref,  # (1, Hpad)     f32    LayerNorm weight (zero-padded)
                     beta_ref,   # (1, Hpad)     f32    LayerNorm bias   (zero-padded)
                     w1_ref,     # (Hpad, F1pad) bf16   fc1 weight (transposed, zero-padded)
                     b1_ref,     # (1, F1pad)    f32
                     w2_ref,     # (F1pad, Opad) bf16   fc2 weight (transposed, zero-padded)
                     b2_ref,     # (1, Opad)     f32
                     out_ref,    # (BB, Opad)    f32
                     gx_scr,     # (TB*BB, 4*Hpad) f32  precomputed x-projection (+ bias)
                     h_scr,      # (BB, Hpad)    f32
                     c_scr,      # (BB, Hpad)    f32
                     *, h_real, unroll):
    ti = pl.program_id(1)
    nt = pl.num_programs(1)
    TB = emb_ref.shape[0]
    Epad = emb_ref.shape[2]
    BB, Hpad = h_scr.shape

    @pl.when(ti == 0)
    def _():
        h_scr[...] = jnp.zeros_like(h_scr)
        c_scr[...] = jnp.zeros_like(c_scr)

    # ---- chunk prologue: input projection hoisted out of the recurrence ----
    # One big bf16 matmul (M = TB*BB) fills the MXU and overlaps with the emb DMA;
    # the LSTM bias is folded in once here instead of every step.
    x_flat = emb_ref[...].reshape(TB * BB, Epad)
    gx_scr[...] = (jnp.dot(x_flat, wih_ref[...], preferred_element_type=jnp.float32)
                   + b_ref[...])

    lens = len_ref[...]                                 # (BB, Hpad) int32
    t_base = ti * TB

    def step(t, carry):
        h, c = carry                                    # f32, live in vregs
        row = pl.multiple_of(t * BB, BB)
        gx = gx_scr[pl.ds(row, BB), :]                  # (BB, 4*Hpad) f32, bias included
        # Serial chain is only the recurrent half: K = Hpad = 128 (single MXU pass).
        gates = gx + jnp.dot(h.astype(jnp.bfloat16), whh_ref[...],
                             preferred_element_type=jnp.float32)
        ifo = _sigmoid(gates[:, :3 * Hpad])             # fused sigmoid over i, f, o
        g = jnp.tanh(gates[:, 3 * Hpad:])
        i = ifo[:, 0 * Hpad:1 * Hpad]
        f = ifo[:, 1 * Hpad:2 * Hpad]
        o = ifo[:, 2 * Hpad:3 * Hpad]
        c_new = f * c + i * g
        h_new = o * jnp.tanh(c_new)
        # pack_padded_sequence: row b only advances while t < length[b].
        upd = (t_base + t) < lens
        h = jnp.where(upd, h_new, h)
        c = jnp.where(upd, c_new, c)
        return h, c

    h, c = lax.fori_loop(0, TB, step, (h_scr[...], c_scr[...]), unroll=unroll)
    h_scr[...] = h
    c_scr[...] = c

    @pl.when(ti == nt - 1)
    def _():
        # pad_packed_sequence + output[:, -1, :]: rows shorter than max(lengths) read a
        # zero hidden vector (LayerNorm then yields beta); rows at max length read h_n.
        h_last = h * fin_ref[...]
        # LayerNorm over the REAL hidden dims, in f32. Padded lanes are exactly zero, so
        # lane-sums equal real-H sums; E[x^2] - mean^2 keeps zero pads from biasing var.
        inv_h = 1.0 / h_real
        mean = jnp.sum(h_last, axis=-1, keepdims=True) * inv_h
        ex2 = jnp.sum(h_last * h_last, axis=-1, keepdims=True) * inv_h
        var = ex2 - mean * mean
        normed = (h_last - mean) * lax.rsqrt(var + LN_EPS)
        normed = normed * gamma_ref[...] + beta_ref[...]       # padded lanes -> 0
        # Dropout is identity in inference (eval) mode.
        z1 = jnp.dot(normed.astype(jnp.bfloat16), w1_ref[...],
                     preferred_element_type=jnp.float32) + b1_ref[...]
        z1 = jnp.maximum(z1, 0.0)
        z2 = jnp.dot(z1.astype(jnp.bfloat16), w2_ref[...],
                     preferred_element_type=jnp.float32) + b2_ref[...]
        out_ref[...] = z2


def init_params(key, vocab_size, embedding_dim, hidden_dim, output_dim):
    ks = jax.random.split(key, 10)
    H = hidden_dim
    params = dict(
        embedding=jax.random.normal(ks[0], (vocab_size, embedding_dim), jnp.float32),
        w_ih=jax.random.normal(ks[1], (4 * H, embedding_dim), jnp.float32) * 0.1,
        w_hh=jax.random.normal(ks[2], (4 * H, H), jnp.float32) * 0.1,
        b_ih=jax.random.normal(ks[3], (4 * H,), jnp.float32) * 0.1,
        b_hh=jax.random.normal(ks[4], (4 * H,), jnp.float32) * 0.1,
        ln_gamma=jnp.ones((H,), jnp.float32),
        ln_beta=jnp.zeros((H,), jnp.float32),
        w1=jax.random.normal(ks[5], (128, H), jnp.float32) * 0.1,
        b1=jax.random.normal(ks[6], (128,), jnp.float32) * 0.1,
        w2=jax.random.normal(ks[7], (output_dim, 128), jnp.float32) * 0.1,
        b2=jax.random.normal(ks[8], (output_dim,), jnp.float32) * 0.1,
    )
    return params


def sentiment_forward(params, text, text_lengths, *, block_t=64, block_b=64):
    """text: (B, T) int32 token ids; text_lengths: (B,) int32. Fully jittable (static T)."""
    B, T = text.shape
    E = params["embedding"].shape[1]
    H = params["w_hh"].shape[1]
    O = params["w2"].shape[0]
    F1 = params["w1"].shape[0]          # 128 in this model

    Hpad = _round_up(H, LANE)
    Epad = _round_up(E, LANE)
    Opad = _round_up(O, LANE)
    F1pad = _round_up(F1, LANE)

    BB = min(_round_up(B, SUBLANE), _round_up(block_b, SUBLANE))
    B_pad = _round_up(B, BB)
    TB = min(T, block_t)
    T_pad = _round_up(T, TB)

    # --- XLA glue: embedding gather (bf16), padding, time-major layout ---
    # TODO(synk): fuse the embedding gather into the kernel (scalar-prefetched token ids +
    # manual DMA of table rows) to drop the (B, T, E) HBM round trip; kept in XLA glue here.
    emb = jnp.take(params["embedding"].astype(jnp.bfloat16), text, axis=0)     # (B, T, E) bf16
    emb = jnp.pad(emb, ((0, B_pad - B), (0, T_pad - T), (0, Epad - E)))
    emb = jnp.transpose(emb, (1, 0, 2))                                        # (T_pad, B_pad, Epad)

    lengths = jnp.pad(text_lengths.astype(jnp.int32), (0, B_pad - B))          # padded rows: length 0
    max_len = jnp.max(text_lengths.astype(jnp.int32))                          # traced; no host sync
    lens_b = jnp.broadcast_to(lengths[:, None], (B_pad, Hpad))
    fin_b = jnp.broadcast_to((lengths == max_len).astype(jnp.float32)[:, None], (B_pad, Hpad))

    def pad_gate_cols(w):
        # (R, 4H) -> (R, 4*Hpad): reorder gates (i,f,g,o)->(i,f,o,g), zero-pad inside each block.
        R = w.shape[0]
        w4 = w.reshape(R, 4, H)[:, GATE_PERM, :]
        return jnp.pad(w4, ((0, 0), (0, 0), (0, Hpad - H))).reshape(R, 4 * Hpad)

    wih = jnp.pad(pad_gate_cols(params["w_ih"].T), ((0, Epad - E), (0, 0))).astype(jnp.bfloat16)
    whh = jnp.pad(pad_gate_cols(params["w_hh"].T), ((0, Hpad - H), (0, 0))).astype(jnp.bfloat16)
    b = jnp.pad((params["b_ih"] + params["b_hh"]).reshape(4, H)[GATE_PERM, :],
                ((0, 0), (0, Hpad - H))).reshape(1, 4 * Hpad)

    gamma = jnp.pad(params["ln_gamma"], (0, Hpad - H)).reshape(1, Hpad)
    beta = jnp.pad(params["ln_beta"], (0, Hpad - H)).reshape(1, Hpad)
    w1 = jnp.pad(params["w1"].T, ((0, Hpad - H), (0, F1pad - F1))).astype(jnp.bfloat16)
    b1 = jnp.pad(params["b1"], (0, F1pad - F1)).reshape(1, F1pad)
    w2 = jnp.pad(params["w2"].T, ((0, F1pad - F1), (0, Opad - O))).astype(jnp.bfloat16)
    b2 = jnp.pad(params["b2"], (0, Opad - O)).reshape(1, Opad)

    grid = (B_pad // BB, T_pad // TB)
    const = lambda bi, ti: (0, 0)
    batch = lambda bi, ti: (bi, 0)
    unroll = max(1, min(8, TB))     # partial unroll: LLO visibility without vreg spills

    out = pl.pallas_call(
        functools.partial(sentiment_kernel, h_real=float(H), unroll=unroll),
        out_shape=jax.ShapeDtypeStruct((B_pad, Opad), jnp.float32),
        grid=grid,
        in_specs=[
            pl.BlockSpec((TB, BB, Epad), lambda bi, ti: (ti, bi, 0)),   # emb, streamed over T
            pl.BlockSpec((Epad, 4 * Hpad), const),                      # W_ih
            pl.BlockSpec((Hpad, 4 * Hpad), const),                      # W_hh
            pl.BlockSpec((1, 4 * Hpad), const),                         # fused LSTM bias
            pl.BlockSpec((BB, Hpad), batch),                            # lengths
            pl.BlockSpec((BB, Hpad), batch),                            # final-step mask
            pl.BlockSpec((1, Hpad), const),                             # ln gamma
            pl.BlockSpec((1, Hpad), const),                             # ln beta
            pl.BlockSpec((Hpad, F1pad), const),                         # fc1 weight
            pl.BlockSpec((1, F1pad), const),                            # fc1 bias
            pl.BlockSpec((F1pad, Opad), const),                         # fc2 weight
            pl.BlockSpec((1, Opad), const),                             # fc2 bias
        ],
        out_specs=pl.BlockSpec((BB, Opad), batch),
        scratch_shapes=[pltpu.VMEM((TB * BB, 4 * Hpad), jnp.float32),   # hoisted x-projection
                        pltpu.VMEM((BB, Hpad), jnp.float32),            # h
                        pltpu.VMEM((BB, Hpad), jnp.float32)],           # c
        compiler_params=pltpu.CompilerParams(
            dimension_semantics=("parallel", "arbitrary"),
            vmem_limit_bytes=32 * 1024 * 1024),
    )(emb, wih, whh, b, lens_b, fin_b, gamma, beta, w1, b1, w2, b2)

    return out[:B, :O]


if __name__ == "__main__":
    key = jax.random.PRNGKey(0)
    k_param, k_text = jax.random.split(key)

    vocab_size = 50
    embedding_dim = 32
    hidden_dim = 32
    batch = 2
    seq = 8

    params = init_params(k_param, vocab_size, embedding_dim, hidden_dim, OUTPUT_DIM)

    text = jax.random.randint(k_text, (batch, seq), 0, vocab_size, dtype=jnp.int32)
    text_lengths = jnp.array([seq, 5], dtype=jnp.int32)   # second row is padded

    fwd = jax.jit(sentiment_forward)
    logits = fwd(params, text, text_lengths)
    jax.block_until_ready(logits)

    assert logits.shape == (batch, OUTPUT_DIM)
    assert bool(jnp.all(jnp.isfinite(logits)))
    print("KERNEL_OK")
</pallas_src>

<mosaic_0001>
module attributes {stable_mosaic.version = 11 : i64} {
  func.func @sentiment_kernel(%arg0: i32, %arg1: i32, %arg2: memref<8x8x128xbf16, #tpu.memory_space<vmem>>, %arg3: memref<128x512xbf16, #tpu.memory_space<vmem>>, %arg4: memref<128x512xbf16, #tpu.memory_space<vmem>>, %arg5: memref<1x512xf32, #tpu.memory_space<vmem>>, %arg6: memref<8x128xi32, #tpu.memory_space<vmem>>, %arg7: memref<8x128xf32, #tpu.memory_space<vmem>>, %arg8: memref<1x128xf32, #tpu.memory_space<vmem>>, %arg9: memref<1x128xf32, #tpu.memory_space<vmem>>, %arg10: memref<128x128xbf16, #tpu.memory_space<vmem>>, %arg11: memref<1x128xf32, #tpu.memory_space<vmem>>, %arg12: memref<128x128xbf16, #tpu.memory_space<vmem>>, %arg13: memref<1x128xf32, #tpu.memory_space<vmem>>, %arg14: memref<8x128xf32, #tpu.memory_space<vmem>>, %arg15: memref<64x512xf32, #tpu.memory_space<vmem>>, %arg16: memref<8x128xf32, #tpu.memory_space<vmem>>, %arg17: memref<8x128xf32, #tpu.memory_space<vmem>>) attributes {dimension_semantics = [#tpu.dimension_semantics<parallel>, #tpu.dimension_semantics<arbitrary>], iteration_bounds = array<i64: 1, 1>, scalar_prefetch = 0 : i64, scratch_operands = 3 : i64, tpu.core_type = #tpu.core_type<tc>, window_params = [{transform_indices = @transform_0, window_bounds = array<i64: 8, 8, 128>}, {pipeline_mode = #tpu.pipeline_mode<synchronous>, transform_indices = @transform_1, window_bounds = array<i64: 128, 512>}, {pipeline_mode = #tpu.pipeline_mode<synchronous>, transform_indices = @transform_2, window_bounds = array<i64: 128, 512>}, {pipeline_mode = #tpu.pipeline_mode<synchronous>, transform_indices = @transform_3, window_bounds = array<i64: 1, 512>}, {transform_indices = @transform_4, window_bounds = array<i64: 8, 128>}, {transform_indices = @transform_5, window_bounds = array<i64: 8, 128>}, {pipeline_mode = #tpu.pipeline_mode<synchronous>, transform_indices = @transform_6, window_bounds = array<i64: 1, 128>}, {pipeline_mode = #tpu.pipeline_mode<synchronous>, transform_indices = @transform_7, window_bounds = array<i64: 1, 128>}, {pipeline_mode = #tpu.pipeline_mode<synchronous>, transform_indices = @transform_8, window_bounds = array<i64: 128, 128>}, {pipeline_mode = #tpu.pipeline_mode<synchronous>, transform_indices = @transform_9, window_bounds = array<i64: 1, 128>}, {pipeline_mode = #tpu.pipeline_mode<synchronous>, transform_indices = @transform_10, window_bounds = array<i64: 128, 128>}, {pipeline_mode = #tpu.pipeline_mode<synchronous>, transform_indices = @transform_11, window_bounds = array<i64: 1, 128>}, {transform_indices = @transform_12, window_bounds = array<i64: 8, 128>}]} {
    %c0_i32 = arith.constant 0 : i32
    %0 = arith.cmpi eq, %arg1, %c0_i32 : i32
    %1 = arith.extui %0 : i1 to i32
    %c0_i32_0 = arith.constant 0 : i32
    %2 = arith.cmpi ne, %1, %c0_i32_0 : i32
    scf.if %2 {
      %cst_87 = arith.constant 0.000000e+00 : f32
      %268 = vector.broadcast %cst_87 : f32 to vector<8x128xf32>
      %c0_88 = arith.constant 0 : index
      %c0_89 = arith.constant 0 : index
      %269 = vector.load %arg16[%c0_88, %c0_89] : memref<8x128xf32, #tpu.memory_space<vmem>>, vector<8x128xf32>
      tpu.vector_store %arg16[%c0_88, %c0_89], %268 {strides = array<i32>} : memref<8x128xf32, #tpu.memory_space<vmem>>, vector<8x128xf32>,
      %cst_90 = arith.constant 0.000000e+00 : f32
      %270 = vector.broadcast %cst_90 : f32 to vector<8x128xf32>
      %c0_91 = arith.constant 0 : index
      %c0_92 = arith.constant 0 : index
      %271 = vector.load %arg17[%c0_91, %c0_92] : memref<8x128xf32, #tpu.memory_space<vmem>>, vector<8x128xf32>
      tpu.vector_store %arg17[%c0_91, %c0_92], %270 {strides = array<i32>} : memref<8x128xf32, #tpu.memory_space<vmem>>, vector<8x128xf32>,
    } else {
    }
    %c0 = arith.constant 0 : index
    %c0_1 = arith.constant 0 : index
    %c0_2 = arith.constant 0 : index
    %3 = vector.load %arg2[%c0, %c0_1, %c0_2] : memref<8x8x128xbf16, #tpu.memory_space<vmem>>, vector<8x8x128xbf16>
    %4 = vector.shape_cast %3 : vector<8x8x128xbf16> to vector<64x128xbf16>
    %c0_3 = arith.constant 0 : index
    %c0_4 = arith.constant 0 : index
    %5 = vector.load %arg3[%c0_3, %c0_4] : memref<128x512xbf16, #tpu.memory_space<vmem>>, vector<128x512xbf16>
    %cst = arith.constant dense<0.000000e+00> : vector<64x512xf32>
    %6 = tpu.matmul %4, %5, %cst {dimension_numbers = #tpu.dot_dimension_numbers<[1], [0], [0], [1], [0, 0, 1, 1], [], []>} : vector<64x128xbf16>, vector<128x512xbf16>, vector<64x512xf32> -> vector<64x512xf32>
    %c0_5 = arith.constant 0 : index
    %c0_6 = arith.constant 0 : index
    %7 = vector.load %arg5[%c0_5, %c0_6] : memref<1x512xf32, #tpu.memory_space<vmem>>, vector<1x512xf32>
    %8 = vector.broadcast %7 : vector<1x512xf32> to vector<64x512xf32>
    %9 = arith.addf %6, %8 : vector<64x512xf32>
    %c0_7 = arith.constant 0 : index
    %c0_8 = arith.constant 0 : index
    %10 = vector.load %arg15[%c0_7, %c0_8] : memref<64x512xf32, #tpu.memory_space<vmem>>, vector<64x512xf32>
    tpu.vector_store %arg15[%c0_7, %c0_8], %9 {strides = array<i32>} : memref<64x512xf32, #tpu.memory_space<vmem>>, vector<64x512xf32>,
    %c0_9 = arith.constant 0 : index
    %c0_10 = arith.constant 0 : index
    %11 = vector.load %arg6[%c0_9, %c0_10] : memref<8x128xi32, #tpu.memory_space<vmem>>, vector<8x128xi32>
    %c8_i32 = arith.constant 8 : i32
    %12 = arith.muli %arg1, %c8_i32 : i32
    %c0_11 = arith.constant 0 : index
    %c0_12 = arith.constant 0 : index
    %13 = vector.load %arg16[%c0_11, %c0_12] : memref<8x128xf32, #tpu.memory_space<vmem>>, vector<8x128xf32>
    %c0_13 = arith.constant 0 : index
    %c0_14 = arith.constant 0 : index
    %14 = vector.load %arg17[%c0_13, %c0_14] : memref<8x128xf32, #tpu.memory_space<vmem>>, vector<8x128xf32>
    %c0_i32_15 = arith.constant 0 : i32
    %c8_i32_16 = arith.constant 8 : i32
    %15 = arith.muli %c0_i32_15, %c8_i32_16 : i32
    %16 = tpu.assume_multiple %15, 8 : i32
    %17 = arith.index_cast %16 : i32 to index
    %c0_17 = arith.constant 0 : index
    %18 = vector.load %arg15[%17, %c0_17] : memref<64x512xf32, #tpu.memory_space<vmem>>, vector<8x512xf32>
    %19 = arith.truncf %13 : vector<8x128xf32> to vector<8x128xbf16>
    %c0_18 = arith.constant 0 : index
    %c0_19 = arith.constant 0 : index
    %20 = vector.load %arg4[%c0_18, %c0_19] : memref<128x512xbf16, #tpu.memory_space<vmem>>, vector<128x512xbf16>
    %cst_20 = arith.constant dense<0.000000e+00> : vector<8x512xf32>
    %21 = tpu.matmul %19, %20, %cst_20 {dimension_numbers = #tpu.dot_dimension_numbers<[1], [0], [0], [1], [0, 0, 1, 1], [], []>} : vector<8x128xbf16>, vector<128x512xbf16>, vector<8x512xf32> -> vector<8x512xf32>
    %22 = arith.addf %18, %21 : vector<8x512xf32>
    %23 = vector.extract_strided_slice %22 {offsets = [0, 0], sizes = [8, 384], strides = [1, 1]} : vector<8x512xf32> to vector<8x384xf32>
    %cst_21 = arith.constant 5.000000e-01 : f32
    %24 = vector.broadcast %cst_21 : f32 to vector<8x384xf32>
    %25 = arith.mulf %24, %23 : vector<8x384xf32>
    %26 = math.tanh %25 : vector<8x384xf32>
    %cst_22 = arith.constant 1.000000e+00 : f32
    %27 = vector.broadcast %cst_22 : f32 to vector<8x384xf32>
    %28 = arith.addf %26, %27 : vector<8x384xf32>
    %cst_23 = arith.constant 5.000000e-01 : f32
    %29 = vector.broadcast %cst_23 : f32 to vector<8x384xf32>
    %30 = arith.mulf %29, %28 : vector<8x384xf32>
    %31 = vector.extract_strided_slice %22 {offsets = [0, 384], sizes = [8, 128], strides = [1, 1]} : vector<8x512xf32> to vector<8x128xf32>
    %32 = math.tanh %31 : vector<8x128xf32>
    %33 = vector.extract_strided_slice %30 {offsets = [0, 0], sizes = [8, 128], strides = [1, 1]} : vector<8x384xf32> to vector<8x128xf32>
    %34 = vector.extract_strided_slice %30 {offsets = [0, 128], sizes = [8, 128], strides = [1, 1]} : vector<8x384xf32> to vector<8x128xf32>
    %35 = vector.extract_strided_slice %30 {offsets = [0, 256], sizes = [8, 128], strides = [1, 1]} : vector<8x384xf32> to vector<8x128xf32>
    %36 = arith.mulf %34, %14 : vector<8x128xf32>
    %37 = arith.mulf %33, %32 : vector<8x128xf32>
    %38 = arith.addf %36, %37 : vector<8x128xf32>
    %39 = math.tanh %38 : vector<8x128xf32>
    %40 = arith.mulf %35, %39 : vector<8x128xf32>
    %41 = arith.addi %12, %c0_i32_15 : i32
    %42 = vector.broadcast %41 : i32 to vector<8x128xi32>
    %43 = arith.cmpi slt, %42, %11 : vector<8x128xi32>
    %44 = arith.select %43, %40, %13 : vector<8x128xi1>, vector<8x128xf32>
    %45 = arith.select %43, %38, %14 : vector<8x128xi1>, vector<8x128xf32>
    %c1_i32 = arith.constant 1 : i32
    %c8_i32_24 = arith.constant 8 : i32
    %46 = arith.muli %c1_i32, %c8_i32_24 : i32
    %47 = tpu.assume_multiple %46, 8 : i32
    %48 = arith.index_cast %47 : i32 to index
    %c0_25 = arith.constant 0 : index
    %49 = vector.load %arg15[%48, %c0_25] : memref<64x512xf32, #tpu.memory_space<vmem>>, vector<8x512xf32>
    %50 = arith.truncf %44 : vector<8x128xf32> to vector<8x128xbf16>
    %c0_26 = arith.constant 0 : index
    %c0_27 = arith.constant 0 : index
    %51 = vector.load %arg4[%c0_26, %c0_27] : memref<128x512xbf16, #tpu.memory_space<vmem>>, vector<128x512xbf16>
    %cst_28 = arith.constant dense<0.000000e+00> : vector<8x512xf32>
    %52 = tpu.matmul %50, %51, %cst_28 {dimension_numbers = #tpu.dot_dimension_numbers<[1], [0], [0], [1], [0, 0, 1, 1], [], []>} : vector<8x128xbf16>, vector<128x512xbf16>, vector<8x512xf32> -> vector<8x512xf32>
    %53 = arith.addf %49, %52 : vector<8x512xf32>
    %54 = vector.extract_strided_slice %53 {offsets = [0, 0], sizes = [8, 384], strides = [1, 1]} : vector<8x512xf32> to vector<8x384xf32>
    %cst_29 = arith.constant 5.000000e-01 : f32
    %55 = vector.broadcast %cst_29 : f32 to vector<8x384xf32>
    %56 = arith.mulf %55, %54 : vector<8x384xf32>
    %57 = math.tanh %56 : vector<8x384xf32>
    %cst_30 = arith.constant 1.000000e+00 : f32
    %58 = vector.broadcast %cst_30 : f32 to vector<8x384xf32>
    %59 = arith.addf %57, %58 : vector<8x384xf32>
    %cst_31 = arith.constant 5.000000e-01 : f32
    %60 = vector.broadcast %cst_31 : f32 to vector<8x384xf32>
    %61 = arith.mulf %60, %59 : vector<8x384xf32>
    %62 = vector.extract_strided_slice %53 {offsets = [0, 384], sizes = [8, 128], strides = [1, 1]} : vector<8x512xf32> to vector<8x128xf32>
    %63 = math.tanh %62 : vector<8x128xf32>
    %64 = vector.extract_strided_slice %61 {offsets = [0, 0], sizes = [8, 128], strides = [1, 1]} : vector<8x384xf32> to vector<8x128xf32>
    %65 = vector.extract_strided_slice %61 {offsets = [0, 128], sizes = [8, 128], strides = [1, 1]} : vector<8x384xf32> to vector<8x128xf32>
    %66 = vector.extract_strided_slice %61 {offsets = [0, 256], sizes = [8, 128], strides = [1, 1]} : vector<8x384xf32> to vector<8x128xf32>
    %67 = arith.mulf %65, %45 : vector<8x128xf32>
    %68 = arith.mulf %64, %63 : vector<8x128xf32>
    %69 = arith.addf %67, %68 : vector<8x128xf32>
    %70 = math.tanh %69 : vector<8x128xf32>
    %71 = arith.mulf %66, %70 : vector<8x128xf32>
    %72 = arith.addi %12, %c1_i32 : i32
    %73 = vector.broadcast %72 : i32 to vector<8x128xi32>
    %74 = arith.cmpi slt, %73, %11 : vector<8x128xi32>
    %75 = arith.select %74, %71, %44 : vector<8x128xi1>, vector<8x128xf32>
    %76 = arith.select %74, %69, %45 : vector<8x128xi1>, vector<8x128xf32>
    %c2_i32 = arith.constant 2 : i32
    %c8_i32_32 = arith.constant 8 : i32
    %77 = arith.muli %c2_i32, %c8_i32_32 : i32
    %78 = tpu.assume_multiple %77, 8 : i32
    %79 = arith.index_cast %78 : i32 to index
    %c0_33 = arith.constant 0 : index
    %80 = vector.load %arg15[%79, %c0_33] : memref<64x512xf32, #tpu.memory_space<vmem>>, vector<8x512xf32>
    %81 = arith.truncf %75 : vector<8x128xf32> to vector<8x128xbf16>
    %c0_34 = arith.constant 0 : index
    %c0_35 = arith.constant 0 : index
    %82 = vector.load %arg4[%c0_34, %c0_35] : memref<128x512xbf16, #tpu.memory_space<vmem>>, vector<128x512xbf16>
    %cst_36 = arith.constant dense<0.000000e+00> : vector<8x512xf32>
    %83 = tpu.matmul %81, %82, %cst_36 {dimension_numbers = #tpu.dot_dimension_numbers<[1], [0], [0], [1], [0, 0, 1, 1], [], []>} : vector<8x128xbf16>, vector<128x512xbf16>, vector<8x512xf32> -> vector<8x512xf32>
    %84 = arith.addf %80, %83 : vector<8x512xf32>
    %85 = vector.extract_strided_slice %84 {offsets = [0, 0], sizes = [8, 384], strides = [1, 1]} : vector<8x512xf32> to vector<8x384xf32>
    %cst_37 = arith.constant 5.000000e-01 : f32
    %86 = vector.broadcast %cst_37 : f32 to vector<8x384xf32>
    %87 = arith.mulf %86, %85 : vector<8x384xf32>
    %88 = math.tanh %87 : vector<8x384xf32>
    %cst_38 = arith.constant 1.000000e+00 : f32
    %89 = vector.broadcast %cst_38 : f32 to vector<8x384xf32>
    %90 = arith.addf %88, %89 : vector<8x384xf32>
    %cst_39 = arith.constant 5.000000e-01 : f32
    %91 = vector.broadcast %cst_39 : f32 to vector<8x384xf32>
    %92 = arith.mulf %91, %90 : vector<8x384xf32>
    %93 = vector.extract_strided_slice %84 {offsets = [0, 384], sizes = [8, 128], strides = [1, 1]} : vector<8x512xf32> to vector<8x128xf32>
    %94 = math.tanh %93 : vector<8x128xf32>
    %95 = vector.extract_strided_slice %92 {offsets = [0, 0], sizes = [8, 128], strides = [1, 1]} : vector<8x384xf32> to vector<8x128xf32>
    %96 = vector.extract_strided_slice %92 {offsets = [0, 128], sizes = [8, 128], strides = [1, 1]} : vector<8x384xf32> to vector<8x128xf32>
    %97 = vector.extract_strided_slice %92 {offsets = [0, 256], sizes = [8, 128], strides = [1, 1]} : vector<8x384xf32> to vector<8x128xf32>
    %98 = arith.mulf %96, %76 : vector<8x128xf32>
    %99 = arith.mulf %95, %94 : vector<8x128xf32>
    %100 = arith.addf %98, %99 : vector<8x128xf32>
    %101 = math.tanh %100 : vector<8x128xf32>
    %102 = arith.mulf %97, %101 : vector<8x128xf32>
    %103 = arith.addi %12, %c2_i32 : i32
    %104 = vector.broadcast %103 : i32 to vector<8x128xi32>
    %105 = arith.cmpi slt, %104, %11 : vector<8x128xi32>
    %106 = arith.select %105, %102, %75 : vector<8x128xi1>, vector<8x128xf32>
    %107 = arith.select %105, %100, %76 : vector<8x128xi1>, vector<8x128xf32>
    %c3_i32 = arith.constant 3 : i32
    %c8_i32_40 = arith.constant 8 : i32
    %108 = arith.muli %c3_i32, %c8_i32_40 : i32
    %109 = tpu.assume_multiple %108, 8 : i32
    %110 = arith.index_cast %109 : i32 to index
    %c0_41 = arith.constant 0 : index
    %111 = vector.load %arg15[%110, %c0_41] : memref<64x512xf32, #tpu.memory_space<vmem>>, vector<8x512xf32>
    %112 = arith.truncf %106 : vector<8x128xf32> to vector<8x128xbf16>
    %c0_42 = arith.constant 0 : index
    %c0_43 = arith.constant 0 : index
    %113 = vector.load %arg4[%c0_42, %c0_43] : memref<128x512xbf16, #tpu.memory_space<vmem>>, vector<128x512xbf16>
    %cst_44 = arith.constant dense<0.000000e+00> : vector<8x512xf32>
    %114 = tpu.matmul %112, %113, %cst_44 {dimension_numbers = #tpu.dot_dimension_numbers<[1], [0], [0], [1], [0, 0, 1, 1], [], []>} : vector<8x128xbf16>, vector<128x512xbf16>, vector<8x512xf32> -> vector<8x512xf32>
    %115 = arith.addf %111, %114 : vector<8x512xf32>
    %116 = vector.extract_strided_slice %115 {offsets = [0, 0], sizes = [8, 384], strides = [1, 1]} : vector<8x512xf32> to vector<8x384xf32>
    %cst_45 = arith.constant 5.000000e-01 : f32
    %117 = vector.broadcast %cst_45 : f32 to vector<8x384xf32>
    %118 = arith.mulf %117, %116 : vector<8x384xf32>
    %119 = math.tanh %118 : vector<8x384xf32>
    %cst_46 = arith.constant 1.000000e+00 : f32
    %120 = vector.broadcast %cst_46 : f32 to vector<8x384xf32>
    %121 = arith.addf %119, %120 : vector<8x384xf32>
    %cst_47 = arith.constant 5.000000e-01 : f32
    %122 = vector.broadcast %cst_47 : f32 to vector<8x384xf32>
    %123 = arith.mulf %122, %121 : vector<8x384xf32>
    %124 = vector.extract_strided_slice %115 {offsets = [0, 384], sizes = [8, 128], strides = [1, 1]} : vector<8x512xf32> to vector<8x128xf32>
    %125 = math.tanh %124 : vector<8x128xf32>
    %126 = vector.extract_strided_slice %123 {offsets = [0, 0], sizes = [8, 128], strides = [1, 1]} : vector<8x384xf32> to vector<8x128xf32>
    %127 = vector.extract_strided_slice %123 {offsets = [0, 128], sizes = [8, 128], strides = [1, 1]} : vector<8x384xf32> to vector<8x128xf32>
    %128 = vector.extract_strided_slice %123 {offsets = [0, 256], sizes = [8, 128], strides = [1, 1]} : vector<8x384xf32> to vector<8x128xf32>
    %129 = arith.mulf %127, %107 : vector<8x128xf32>
    %130 = arith.mulf %126, %125 : vector<8x128xf32>
    %131 = arith.addf %129, %130 : vector<8x128xf32>
    %132 = math.tanh %131 : vector<8x128xf32>
    %133 = arith.mulf %128, %132 : vector<8x128xf32>
    %134 = arith.addi %12, %c3_i32 : i32
    %135 = vector.broadcast %134 : i32 to vector<8x128xi32>
    %136 = arith.cmpi slt, %135, %11 : vector<8x128xi32>
    %137 = arith.select %136, %133, %106 : vector<8x128xi1>, vector<8x128xf32>
    %138 = arith.select %136, %131, %107 : vector<8x128xi1>, vector<8x128xf32>
    %c4_i32 = arith.constant 4 : i32
    %c8_i32_48 = arith.constant 8 : i32
    %139 = arith.muli %c4_i32, %c8_i32_48 : i32
    %140 = tpu.assume_multiple %139, 8 : i32
    %141 = arith.index_cast %140 : i32 to index
    %c0_49 = arith.constant 0 : index
    %142 = vector.load %arg15[%141, %c0_49] : memref<64x512xf32, #tpu.memory_space<vmem>>, vector<8x512xf32>
    %143 = arith.truncf %137 : vector<8x128xf32> to vector<8x128xbf16>
    %c0_50 = arith.constant 0 : index
    %c0_51 = arith.constant 0 : index
    %144 = vector.load %arg4[%c0_50, %c0_51] : memref<128x512xbf16, #tpu.memory_space<vmem>>, vector<128x512xbf16>
    %cst_52 = arith.constant dense<0.000000e+00> : vector<8x512xf32>
    %145 = tpu.matmul %143, %144, %cst_52 {dimension_numbers = #tpu.dot_dimension_numbers<[1], [0], [0], [1], [0, 0, 1, 1], [], []>} : vector<8x128xbf16>, vector<128x512xbf16>, vector<8x512xf32> -> vector<8x512xf32>
    %146 = arith.addf %142, %145 : vector<8x512xf32>
    %147 = vector.extract_strided_slice %146 {offsets = [0, 0], sizes = [8, 384], strides = [1, 1]} : vector<8x512xf32> to vector<8x384xf32>
    %cst_53 = arith.constant 5.000000e-01 : f32
    %148 = vector.broadcast %cst_53 : f32 to vector<8x384xf32>
    %149 = arith.mulf %148, %147 : vector<8x384xf32>
    %150 = math.tanh %149 : vector<8x384xf32>
    %cst_54 = arith.constant 1.000000e+00 : f32
    %151 = vector.broadcast %cst_54 : f32 to vector<8x384xf32>
    %152 = arith.addf %150, %151 : vector<8x384xf32>
    %cst_55 = arith.constant 5.000000e-01 : f32
    %153 = vector.broadcast %cst_55 : f32 to vector<8x384xf32>
    %154 = arith.mulf %153, %152 : vector<8x384xf32>
    %155 = vector.extract_strided_slice %146 {offsets = [0, 384], sizes = [8, 128], strides = [1, 1]} : vector<8x512xf32> to vector<8x128xf32>
    %156 = math.tanh %155 : vector<8x128xf32>
    %157 = vector.extract_strided_slice %154 {offsets = [0, 0], sizes = [8, 128], strides = [1, 1]} : vector<8x384xf32> to vector<8x128xf32>
    %158 = vector.extract_strided_slice %154 {offsets = [0, 128], sizes = [8, 128], strides = [1, 1]} : vector<8x384xf32> to vector<8x128xf32>
    %159 = vector.extract_strided_slice %154 {offsets = [0, 256], sizes = [8, 128], strides = [1, 1]} : vector<8x384xf32> to vector<8x128xf32>
    %160 = arith.mulf %158, %138 : vector<8x128xf32>
    %161 = arith.mulf %157, %156 : vector<8x128xf32>
    %162 = arith.addf %160, %161 : vector<8x128xf32>
    %163 = math.tanh %162 : vector<8x128xf32>
    %164 = arith.mulf %159, %163 : vector<8x128xf32>
    %165 = arith.addi %12, %c4_i32 : i32
    %166 = vector.broadcast %165 : i32 to vector<8x128xi32>
    %167 = arith.cmpi slt, %166, %11 : vector<8x128xi32>
    %168 = arith.select %167, %164, %137 : vector<8x128xi1>, vector<8x128xf32>
    %169 = arith.select %167, %162, %138 : vector<8x128xi1>, vector<8x128xf32>
    %c5_i32 = arith.constant 5 : i32
    %c8_i32_56 = arith.constant 8 : i32
    %170 = arith.muli %c5_i32, %c8_i32_56 : i32
    %171 = tpu.assume_multiple %170, 8 : i32
    %172 = arith.index_cast %171 : i32 to index
    %c0_57 = arith.constant 0 : index
    %173 = vector.load %arg15[%172, %c0_57] : memref<64x512xf32, #tpu.memory_space<vmem>>, vector<8x512xf32>
    %174 = arith.truncf %168 : vector<8x128xf32> to vector<8x128xbf16>
    %c0_58 = arith.constant 0 : index
    %c0_59 = arith.constant 0 : index
    %175 = vector.load %arg4[%c0_58, %c0_59] : memref<128x512xbf16, #tpu.memory_space<vmem>>, vector<128x512xbf16>
    %cst_60 = arith.constant dense<0.000000e+00> : vector<8x512xf32>
    %176 = tpu.matmul %174, %175, %cst_60 {dimension_numbers = #tpu.dot_dimension_numbers<[1], [0], [0], [1], [0, 0, 1, 1], [], []>} : vector<8x128xbf16>, vector<128x512xbf16>, vector<8x512xf32> -> vector<8x512xf32>
    %177 = arith.addf %173, %176 : vector<8x512xf32>
    %178 = vector.extract_strided_slice %177 {offsets = [0, 0], sizes = [8, 384], strides = [1, 1]} : vector<8x512xf32> to vector<8x384xf32>
    %cst_61 = arith.constant 5.000000e-01 : f32
    %179 = vector.broadcast %cst_61 : f32 to vector<8x384xf32>
    %180 = arith.mulf %179, %178 : vector<8x384xf32>
    %181 = math.tanh %180 : vector<8x384xf32>
    %cst_62 = arith.constant 1.000000e+00 : f32
    %182 = vector.broadcast %cst_62 : f32 to vector<8x384xf32>
    %183 = arith.addf %181, %182 : vector<8x384xf32>
    %cst_63 = arith.constant 5.000000e-01 : f32
    %184 = vector.broadcast %cst_63 : f32 to vector<8x384xf32>
    %185 = arith.mulf %184, %183 : vector<8x384xf32>
    %186 = vector.extract_strided_slice %177 {offsets = [0, 384], sizes = [8, 128], strides = [1, 1]} : vector<8x512xf32> to vector<8x128xf32>
    %187 = math.tanh %186 : vector<8x128xf32>
    %188 = vector.extract_strided_slice %185 {offsets = [0, 0], sizes = [8, 128], strides = [1, 1]} : vector<8x384xf32> to vector<8x128xf32>
    %189 = vector.extract_strided_slice %185 {offsets = [0, 128], sizes = [8, 128], strides = [1, 1]} : vector<8x384xf32> to vector<8x128xf32>
    %190 = vector.extract_strided_slice %185 {offsets = [0, 256], sizes = [8, 128], strides = [1, 1]} : vector<8x384xf32> to vector<8x128xf32>
    %191 = arith.mulf %189, %169 : vector<8x128xf32>
    %192 = arith.mulf %188, %187 : vector<8x128xf32>
    %193 = arith.addf %191, %192 : vector<8x128xf32>
    %194 = math.tanh %193 : vector<8x128xf32>
    %195 = arith.mulf %190, %194 : vector<8x128xf32>
    %196 = arith.addi %12, %c5_i32 : i32
    %197 = vector.broadcast %196 : i32 to vector<8x128xi32>
    %198 = arith.cmpi slt, %197, %11 : vector<8x128xi32>
    %199 = arith.select %198, %195, %168 : vector<8x128xi1>, vector<8x128xf32>
    %200 = arith.select %198, %193, %169 : vector<8x128xi1>, vector<8x128xf32>
    %c6_i32 = arith.constant 6 : i32
    %c8_i32_64 = arith.constant 8 : i32
    %201 = arith.muli %c6_i32, %c8_i32_64 : i32
    %202 = tpu.assume_multiple %201, 8 : i32
    %203 = arith.index_cast %202 : i32 to index
    %c0_65 = arith.constant 0 : index
    %204 = vector.load %arg15[%203, %c0_65] : memref<64x512xf32, #tpu.memory_space<vmem>>, vector<8x512xf32>
    %205 = arith.truncf %199 : vector<8x128xf32> to vector<8x128xbf16>
    %c0_66 = arith.constant 0 : index
    %c0_67 = arith.constant 0 : index
    %206 = vector.load %arg4[%c0_66, %c0_67] : memref<128x512xbf16, #tpu.memory_space<vmem>>, vector<128x512xbf16>
    %cst_68 = arith.constant dense<0.000000e+00> : vector<8x512xf32>
    %207 = tpu.matmul %205, %206, %cst_68 {dimension_numbers = #tpu.dot_dimension_numbers<[1], [0], [0], [1], [0, 0, 1, 1], [], []>} : vector<8x128xbf16>, vector<128x512xbf16>, vector<8x512xf32> -> vector<8x512xf32>
    %208 = arith.addf %204, %207 : vector<8x512xf32>
    %209 = vector.extract_strided_slice %208 {offsets = [0, 0], sizes = [8, 384], strides = [1, 1]} : vector<8x512xf32> to vector<8x384xf32>
    %cst_69 = arith.constant 5.000000e-01 : f32
    %210 = vector.broadcast %cst_69 : f32 to vector<8x384xf32>
    %211 = arith.mulf %210, %209 : vector<8x384xf32>
    %212 = math.tanh %211 : vector<8x384xf32>
    %cst_70 = arith.constant 1.000000e+00 : f32
    %213 = vector.broadcast %cst_70 : f32 to vector<8x384xf32>
    %214 = arith.addf %212, %213 : vector<8x384xf32>
    %cst_71 = arith.constant 5.000000e-01 : f32
    %215 = vector.broadcast %cst_71 : f32 to vector<8x384xf32>
    %216 = arith.mulf %215, %214 : vector<8x384xf32>
    %217 = vector.extract_strided_slice %208 {offsets = [0, 384], sizes = [8, 128], strides = [1, 1]} : vector<8x512xf32> to vector<8x128xf32>
    %218 = math.tanh %217 : vector<8x128xf32>
    %219 = vector.extract_strided_slice %216 {offsets = [0, 0], sizes = [8, 128], strides = [1, 1]} : vector<8x384xf32> to vector<8x128xf32>
    %220 = vector.extract_strided_slice %216 {offsets = [0, 128], sizes = [8, 128], strides = [1, 1]} : vector<8x384xf32> to vector<8x128xf32>
    %221 = vector.extract_strided_slice %216 {offsets = [0, 256], sizes = [8, 128], strides = [1, 1]} : vector<8x384xf32> to vector<8x128xf32>
    %222 = arith.mulf %220, %200 : vector<8x128xf32>
    %223 = arith.mulf %219, %218 : vector<8x128xf32>
    %224 = arith.addf %222, %223 : vector<8x128xf32>
    %225 = math.tanh %224 : vector<8x128xf32>
    %226 = arith.mulf %221, %225 : vector<8x128xf32>
    %227 = arith.addi %12, %c6_i32 : i32
    %228 = vector.broadcast %227 : i32 to vector<8x128xi32>
    %229 = arith.cmpi slt, %228, %11 : vector<8x128xi32>
    %230 = arith.select %229, %226, %199 : vector<8x128xi1>, vector<8x128xf32>
    %231 = arith.select %229, %224, %200 : vector<8x128xi1>, vector<8x128xf32>
    %c7_i32 = arith.constant 7 : i32
    %c8_i32_72 = arith.constant 8 : i32
    %232 = arith.muli %c7_i32, %c8_i32_72 : i32
    %233 = tpu.assume_multiple %232, 8 : i32
    %234 = arith.index_cast %233 : i32 to index
    %c0_73 = arith.constant 0 : index
    %235 = vector.load %arg15[%234, %c0_73] : memref<64x512xf32, #tpu.memory_space<vmem>>, vector<8x512xf32>
    %236 = arith.truncf %230 : vector<8x128xf32> to vector<8x128xbf16>
    %c0_74 = arith.constant 0 : index
    %c0_75 = arith.constant 0 : index
    %237 = vector.load %arg4[%c0_74, %c0_75] : memref<128x512xbf16, #tpu.memory_space<vmem>>, vector<128x512xbf16>
    %cst_76 = arith.constant dense<0.000000e+00> : vector<8x512xf32>
    %238 = tpu.matmul %236, %237, %cst_76 {dimension_numbers = #tpu.dot_dimension_numbers<[1], [0], [0], [1], [0, 0, 1, 1], [], []>} : vector<8x128xbf16>, vector<128x512xbf16>, vector<8x512xf32> -> vector<8x512xf32>
    %239 = arith.addf %235, %238 : vector<8x512xf32>
    %240 = vector.extract_strided_slice %239 {offsets = [0, 0], sizes = [8, 384], strides = [1, 1]} : vector<8x512xf32> to vector<8x384xf32>
    %cst_77 = arith.constant 5.000000e-01 : f32
    %241 = vector.broadcast %cst_77 : f32 to vector<8x384xf32>
    %242 = arith.mulf %241, %240 : vector<8x384xf32>
    %243 = math.tanh %242 : vector<8x384xf32>
    %cst_78 = arith.constant 1.000000e+00 : f32
    %244 = vector.broadcast %cst_78 : f32 to vector<8x384xf32>
    %245 = arith.addf %243, %244 : vector<8x384xf32>
    %cst_79 = arith.constant 5.000000e-01 : f32
    %246 = vector.broadcast %cst_79 : f32 to vector<8x384xf32>
    %247 = arith.mulf %246, %245 : vector<8x384xf32>
    %248 = vector.extract_strided_slice %239 {offsets = [0, 384], sizes = [8, 128], strides = [1, 1]} : vector<8x512xf32> to vector<8x128xf32>
    %249 = math.tanh %248 : vector<8x128xf32>
    %250 = vector.extract_strided_slice %247 {offsets = [0, 0], sizes = [8, 128], strides = [1, 1]} : vector<8x384xf32> to vector<8x128xf32>
    %251 = vector.extract_strided_slice %247 {offsets = [0, 128], sizes = [8, 128], strides = [1, 1]} : vector<8x384xf32> to vector<8x128xf32>
    %252 = vector.extract_strided_slice %247 {offsets = [0, 256], sizes = [8, 128], strides = [1, 1]} : vector<8x384xf32> to vector<8x128xf32>
    %253 = arith.mulf %251, %231 : vector<8x128xf32>
    %254 = arith.mulf %250, %249 : vector<8x128xf32>
    %255 = arith.addf %253, %254 : vector<8x128xf32>
    %256 = math.tanh %255 : vector<8x128xf32>
    %257 = arith.mulf %252, %256 : vector<8x128xf32>
    %258 = arith.addi %12, %c7_i32 : i32
    %259 = vector.broadcast %258 : i32 to vector<8x128xi32>
    %260 = arith.cmpi slt, %259, %11 : vector<8x128xi32>
    %261 = arith.select %260, %257, %230 : vector<8x128xi1>, vector<8x128xf32>
    %262 = arith.select %260, %255, %231 : vector<8x128xi1>, vector<8x128xf32>
    %c8_i32_80 = arith.constant 8 : i32
    %c0_81 = arith.constant 0 : index
    %c0_82 = arith.constant 0 : index
    %263 = vector.load %arg16[%c0_81, %c0_82] : memref<8x128xf32, #tpu.memory_space<vmem>>, vector<8x128xf32>
    tpu.vector_store %arg16[%c0_81, %c0_82], %261 {strides = array<i32>} : memref<8x128xf32, #tpu.memory_space<vmem>>, vector<8x128xf32>,
    %c0_83 = arith.constant 0 : index
    %c0_84 = arith.constant 0 : index
    %264 = vector.load %arg17[%c0_83, %c0_84] : memref<8x128xf32, #tpu.memory_space<vmem>>, vector<8x128xf32>
    tpu.vector_store %arg17[%c0_83, %c0_84], %262 {strides = array<i32>} : memref<8x128xf32, #tpu.memory_space<vmem>>, vector<8x128xf32>,
    %c0_i32_85 = arith.constant 0 : i32
    %265 = arith.cmpi eq, %arg1, %c0_i32_85 : i32
    %266 = arith.extui %265 : i1 to i32
    %c0_i32_86 = arith.constant 0 : i32
    %267 = arith.cmpi ne, %266, %c0_i32_86 : i32
    scf.if %267 {
      %c0_87 = arith.constant 0 : index
      %c0_88 = arith.constant 0 : index
      %268 = vector.load %arg7[%c0_87, %c0_88] : memref<8x128xf32, #tpu.memory_space<vmem>>, vector<8x128xf32>
      %269 = arith.mulf %261, %268 : vector<8x128xf32>
      %cst_89 = arith.constant dense<0.000000e+00> : vector<8xf32>
      %270 = vector.multi_reduction <add>, %269, %cst_89 [1] : vector<8x128xf32> to vector<8xf32>
      %271 = vector.shape_cast %270 : vector<8xf32> to vector<8x1xf32>
      %cst_90 = arith.constant 3.125000e-02 : f32
      %272 = vector.broadcast %cst_90 : f32 to vector<8x1xf32>
      %273 = arith.mulf %271, %272 : vector<8x1xf32>
      %274 = arith.mulf %269, %269 : vector<8x128xf32>
      %cst_91 = arith.constant dense<0.000000e+00> : vector<8xf32>
      %275 = vector.multi_reduction <add>, %274, %cst_91 [1] : vector<8x128xf32> to vector<8xf32>
      %276 = vector.shape_cast %275 : vector<8xf32> to vector<8x1xf32>
      %cst_92 = arith.constant 3.125000e-02 : f32
      %277 = vector.broadcast %cst_92 : f32 to vector<8x1xf32>
      %278 = arith.mulf %276, %277 : vector<8x1xf32>
      %279 = arith.mulf %273, %273 : vector<8x1xf32>
      %280 = arith.subf %278, %279 : vector<8x1xf32>
      %281 = vector.broadcast %273 : vector<8x1xf32> to vector<8x128xf32>
      %282 = arith.subf %269, %281 : vector<8x128xf32>
      %cst_93 = arith.constant 9.99999974E-6 : f32
      %283 = vector.broadcast %cst_93 : f32 to vector<8x1xf32>
      %284 = arith.addf %280, %283 : vector<8x1xf32>
      %285 = math.rsqrt %284 : vector<8x1xf32>
      %286 = vector.broadcast %285 : vector<8x1xf32> to vector<8x128xf32>
      %287 = arith.mulf %282, %286 : vector<8x128xf32>
      %c0_94 = arith.constant 0 : index
      %c0_95 = arith.constant 0 : index
      %288 = vector.load %arg8[%c0_94, %c0_95] : memref<1x128xf32, #tpu.memory_space<vmem>>, vector<1x128xf32>
      %289 = vector.broadcast %288 : vector<1x128xf32> to vector<8x128xf32>
      %290 = arith.mulf %287, %289 : vector<8x128xf32>
      %c0_96 = arith.constant 0 : index
      %c0_97 = arith.constant 0 : index
      %291 = vector.load %arg9[%c0_96, %c0_97] : memref<1x128xf32, #tpu.memory_space<vmem>>, vector<1x128xf32>
      %292 = vector.broadcast %291 : vector<1x128xf32> to vector<8x128xf32>
      %293 = arith.addf %290, %292 : vector<8x128xf32>
      %294 = arith.truncf %293 : vector<8x128xf32> to vector<8x128xbf16>
      %c0_98 = arith.constant 0 : index
      %c0_99 = arith.constant 0 : index
      %295 = vector.load %arg10[%c0_98, %c0_99] : memref<128x128xbf16, #tpu.memory_space<vmem>>, vector<128x128xbf16>
      %cst_100 = arith.constant dense<0.000000e+00> : vector<8x128xf32>
      %296 = tpu.matmul %294, %295, %cst_100 {dimension_numbers = #tpu.dot_dimension_numbers<[1], [0], [0], [1], [0, 0, 1, 1], [], []>} : vector<8x128xbf16>, vector<128x128xbf16>, vector<8x128xf32> -> vector<8x128xf32>
      %c0_101 = arith.constant 0 : index
      %c0_102 = arith.constant 0 : index
      %297 = vector.load %arg11[%c0_101, %c0_102] : memref<1x128xf32, #tpu.memory_space<vmem>>, vector<1x128xf32>
      %298 = vector.broadcast %297 : vector<1x128xf32> to vector<8x128xf32>
      %299 = arith.addf %296, %298 : vector<8x128xf32>
      %cst_103 = arith.constant 0.000000e+00 : f32
      %300 = vector.broadcast %cst_103 : f32 to vector<8x128xf32>
      %301 = arith.maximumf %299, %300 : vector<8x128xf32>
      %302 = arith.truncf %301 : vector<8x128xf32> to vector<8x128xbf16>
      %c0_104 = arith.constant 0 : index
      %c0_105 = arith.constant 0 : index
      %303 = vector.load %arg12[%c0_104, %c0_105] : memref<128x128xbf16, #tpu.memory_space<vmem>>, vector<128x128xbf16>
      %cst_106 = arith.constant dense<0.000000e+00> : vector<8x128xf32>
      %304 = tpu.matmul %302, %303, %cst_106 {dimension_numbers = #tpu.dot_dimension_numbers<[1], [0], [0], [1], [0, 0, 1, 1], [], []>} : vector<8x128xbf16>, vector<128x128xbf16>, vector<8x128xf32> -> vector<8x128xf32>
      %c0_107 = arith.constant 0 : index
      %c0_108 = arith.constant 0 : index
      %305 = vector.load %arg13[%c0_107, %c0_108] : memref<1x128xf32, #tpu.memory_space<vmem>>, vector<1x128xf32>
      %306 = vector.broadcast %305 : vector<1x128xf32> to vector<8x128xf32>
      %307 = arith.addf %304, %306 : vector<8x128xf32>
      %c0_109 = arith.constant 0 : index
      %c0_110 = arith.constant 0 : index
      %308 = vector.load %arg14[%c0_109, %c0_110] : memref<8x128xf32, #tpu.memory_space<vmem>>, vector<8x128xf32>
      tpu.vector_store %arg14[%c0_109, %c0_110], %307 {strides = array<i32>} : memref<8x128xf32, #tpu.memory_space<vmem>>, vector<8x128xf32>,
    } else {
    }
    return
  }
  func.func @transform_0(%arg0: i32, %arg1: i32) -> (i32, i32, i32) {
    %c0_i32 = arith.constant 0 : i32
    %c0_i32_0 = arith.constant 0 : i32
    return %arg1, %arg0, %c0_i32 : i32, i32, i32
  }
  func.func @transform_1(%arg0: i32, %arg1: i32) -> (i32, i32) {
    %c0_i32 = arith.constant 0 : i32
    %c0_i32_0 = arith.constant 0 : i32
    %c0_i32_1 = arith.constant 0 : i32
    return %c0_i32, %c0_i32_0 : i32, i32
  }
  func.func @transform_2(%arg0: i32, %arg1: i32) -> (i32, i32) {
    %c0_i32 = arith.constant 0 : i32
    %c0_i32_0 = arith.constant 0 : i32
    %c0_i32_1 = arith.constant 0 : i32
    return %c0_i32, %c0_i32_0 : i32, i32
  }
  func.func @transform_3(%arg0: i32, %arg1: i32) -> (i32, i32) {
    %c0_i32 = arith.constant 0 : i32
    %c0_i32_0 = arith.constant 0 : i32
    %c0_i32_1 = arith.constant 0 : i32
    return %c0_i32, %c0_i32_0 : i32, i32
  }
  func.func @transform_4(%arg0: i32, %arg1: i32) -> (i32, i32) {
    %c0_i32 = arith.constant 0 : i32
    %c0_i32_0 = arith.constant 0 : i32
    return %arg0, %c0_i32 : i32, i32
  }
  func.func @transform_5(%arg0: i32, %arg1: i32) -> (i32, i32) {
    %c0_i32 = arith.constant 0 : i32
    %c0_i32_0 = arith.constant 0 : i32
    return %arg0, %c0_i32 : i32, i32
  }
  func.func @transform_6(%arg0: i32, %arg1: i32) -> (i32, i32) {
    %c0_i32 = arith.constant 0 : i32
    %c0_i32_0 = arith.constant 0 : i32
    %c0_i32_1 = arith.constant 0 : i32
    return %c0_i32, %c0_i32_0 : i32, i32
  }
  func.func @transform_7(%arg0: i32, %arg1: i32) -> (i32, i32) {
    %c0_i32 = arith.constant 0 : i32
    %c0_i32_0 = arith.constant 0 : i32
    %c0_i32_1 = arith.constant 0 : i32
    return %c0_i32, %c0_i32_0 : i32, i32
  }
  func.func @transform_8(%arg0: i32, %arg1: i32) -> (i32, i32) {
    %c0_i32 = arith.constant 0 : i32
    %c0_i32_0 = arith.constant 0 : i32
    %c0_i32_1 = arith.constant 0 : i32
    return %c0_i32, %c0_i32_0 : i32, i32
  }
  func.func @transform_9(%arg0: i32, %arg1: i32) -> (i32, i32) {
    %c0_i32 = arith.constant 0 : i32
    %c0_i32_0 = arith.constant 0 : i32
    %c0_i32_1 = arith.constant 0 : i32
    return %c0_i32, %c0_i32_0 : i32, i32
  }
  func.func @transform_10(%arg0: i32, %arg1: i32) -> (i32, i32) {
    %c0_i32 = arith.constant 0 : i32
    %c0_i32_0 = arith.constant 0 : i32
    %c0_i32_1 = arith.constant 0 : i32
    return %c0_i32, %c0_i32_0 : i32, i32
  }
  func.func @transform_11(%arg0: i32, %arg1: i32) -> (i32, i32) {
    %c0_i32 = arith.constant 0 : i32
    %c0_i32_0 = arith.constant 0 : i32
    %c0_i32_1 = arith.constant 0 : i32
    return %c0_i32, %c0_i32_0 : i32, i32
  }
  func.func @transform_12(%arg0: i32, %arg1: i32) -> (i32, i32) {
    %c0_i32 = arith.constant 0 : i32
    %c0_i32_0 = arith.constant 0 : i32
    return %arg0, %c0_i32 : i32, i32
  }
}

</mosaic_0001>

<llo_original>
// kernel: sentiment_forward.1
$region0: #{sentiment_forward.1}
  #allocation0 [shape = 'u32[]', space=smem, size = 0x4, offset = 0x4, fixed_abs, tag = 'smem constant byte address 0x4 - core index']
  #allocation1 [shape = 'u32[72,128]{1,0:T(1,128)}', space=vmem, size = 0x9000, scoped, tag = 'internal scratch']
  #allocation2 [shape = 'f32[64,512]{1,0:T(8,128)}', space=vmem, size = 0x20000, scoped, tag = 'scratch operand']
  #allocation3 [shape = 'f32[8,128]{1,0:T(8,128)}', space=vmem, size = 0x1000, scoped, tag = 'scratch operand']
  #allocation4 [shape = 'f32[8,128]{1,0:T(8,128)}', space=vmem, size = 0x1000, scoped, tag = 'scratch operand']
  %s0 = inlined_call_operand.vmem [shape: bf16[8,8,128], index: 0, kind: input, shape index: {}]
  %s1 = inlined_call_operand.vmem [shape: bf16[128,512], index: 1, kind: input, shape index: {}]
  %s2 = inlined_call_operand.vmem [shape: bf16[128,512], index: 2, kind: input, shape index: {}]
  %s3 = inlined_call_operand.vmem [shape: f32[1,512], index: 3, kind: input, shape index: {}]
  %s4 = inlined_call_operand.vmem [shape: s32[8,128], index: 4, kind: input, shape index: {}]
  %s5 = inlined_call_operand.vmem [shape: f32[8,128], index: 5, kind: input, shape index: {}]
  %s6 = inlined_call_operand.vmem [shape: f32[1,128], index: 6, kind: input, shape index: {}]
  %s7 = inlined_call_operand.vmem [shape: f32[1,128], index: 7, kind: input, shape index: {}]
  %s8 = inlined_call_operand.vmem [shape: bf16[128,128], index: 8, kind: input, shape index: {}]
  %s9 = inlined_call_operand.vmem [shape: f32[1,128], index: 9, kind: input, shape index: {}]
  %s10 = inlined_call_operand.vmem [shape: bf16[128,128], index: 10, kind: input, shape index: {}]
  %s11 = inlined_call_operand.vmem [shape: f32[1,128], index: 11, kind: input, shape index: {}]
  %s12 = inlined_call_operand.vmem [shape: f32[8,128], index: 12, kind: output, shape index: {}]
  %s13 = sld [smem:[#allocation0]]
  $region66: #{sentiment_forward.1} parent=0
    _
  %s15 = ssub.s32 1, %s13
  %s16 = scalar_select 0, %s15, %s13
  // Predicated region
  $region2: #{sentiment_forward.1} parent=0 // pred_check
    _
  $region3: #{sentiment_forward.1} parent=0 // pred_check_branch
    %18 = sbr.rel (0) target = $region5
  $region4: #{sentiment_forward.1} parent=0 // pred_region
    _
  $region5: #{sentiment_forward.1} parent=0 // pred_fallthru
    _
  // Predicated region
  $region6: #{sentiment_forward.1} parent=0 // pred_check
    _
  $region7: #{sentiment_forward.1} parent=0 // pred_check_branch
    %20 = sbr.rel (0) target = $region9
  $region8: #{sentiment_forward.1} parent=0 // pred_region
    _
  $region9: #{sentiment_forward.1} parent=0 // pred_fallthru
    _
  // Predicated region
  $region10: #{sentiment_forward.1} parent=0 // pred_check
    _
  $region11: #{sentiment_forward.1} parent=0 // pred_check_branch
    %22 = sbr.rel (0) target = $region13
  $region12: #{sentiment_forward.1} parent=0 // pred_region
    _
  $region13: #{sentiment_forward.1} parent=0 // pred_fallthru
    _
  // Predicated region
  $region14: #{sentiment_forward.1} parent=0 // pred_check
    _
  $region15: #{sentiment_forward.1} parent=0 // pred_check_branch
    %24 = sbr.rel (0) target = $region17
  $region16: #{sentiment_forward.1} parent=0 // pred_region
    _
  $region17: #{sentiment_forward.1} parent=0 // pred_fallthru
    _
  // Predicated region
  $region18: #{sentiment_forward.1} parent=0 // pred_check
    _
  $region19: #{sentiment_forward.1} parent=0 // pred_check_branch
    %26 = sbr.rel (0) target = $region21
  $region20: #{sentiment_forward.1} parent=0 // pred_region
    _
  $region21: #{sentiment_forward.1} parent=0 // pred_fallthru
    _
  // Predicated region
  $region22: #{sentiment_forward.1} parent=0 // pred_check
    _
  $region23: #{sentiment_forward.1} parent=0 // pred_check_branch
    %28 = sbr.rel (0) target = $region25
  $region24: #{sentiment_forward.1} parent=0 // pred_region
    _
  $region25: #{sentiment_forward.1} parent=0 // pred_fallthru
    _
  // Predicated region
  $region26: #{sentiment_forward.1} parent=0 // pred_check
    _
  $region27: #{sentiment_forward.1} parent=0 // pred_check_branch
    %30 = sbr.rel (0) target = $region29
  $region28: #{sentiment_forward.1} parent=0 // pred_region
    _
  $region29: #{sentiment_forward.1} parent=0 // pred_fallthru
    _
  // Predicated region
  $region30: #{sentiment_forward.1} parent=0 // pred_check
    _
  $region31: #{sentiment_forward.1} parent=0 // pred_check_branch
    %32 = sbr.rel (0) target = $region33
  $region32: #{sentiment_forward.1} parent=0 // pred_region
    _
  $region33: #{sentiment_forward.1} parent=0 // pred_fallthru
    _
  // Predicated region
  $region34: #{sentiment_forward.1} parent=0 // pred_check
    _
  $region35: #{sentiment_forward.1} parent=0 // pred_check_branch
    %34 = sbr.rel (0) target = $region37
  $region36: #{sentiment_forward.1} parent=0 // pred_region
    _
  $region37: #{sentiment_forward.1} parent=0 // pred_fallthru
    _
  // Predicated region
  $region38: #{sentiment_forward.1} parent=0 // pred_check
    _
  $region39: #{sentiment_forward.1} parent=0 // pred_check_branch
    %36 = sbr.rel (0) target = $region41
  $region40: #{sentiment_forward.1} parent=0 // pred_region
    _
  $region41: #{sentiment_forward.1} parent=0 // pred_fallthru
    _
  // Predicated region
  $region42: #{sentiment_forward.1} parent=0 // pred_check
    _
  $region43: #{sentiment_forward.1} parent=0 // pred_check_branch
    %38 = sbr.rel (0) target = $region45
  $region44: #{sentiment_forward.1} parent=0 // pred_region
    _
  $region45: #{sentiment_forward.1} parent=0 // pred_fallthru
    _
  // Predicated region
  $region46: #{sentiment_forward.1} parent=0 // pred_check
    _
  $region47: #{sentiment_forward.1} parent=0 // pred_check_branch
    %40 = sbr.rel (0) target = $region49
  $region48: #{sentiment_forward.1} parent=0 // pred_region
    _
  $region49: #{sentiment_forward.1} parent=0 // pred_fallthru
    _
  %p41 = scmp.eq.s32.totalorder 0, 0
  // Predicated region
  $region50: #{sentiment_forward.1} parent=0 // pred_check
    %p42 = pneg %p41
  $region51: #{sentiment_forward.1} parent=0 // pred_check_branch
    %44 = sbr.rel (%p42) target = $region53
  $region52: #{sentiment_forward.1} parent=0 // pred_region
    %45 = vst [vmem:[#allocation3] sm:$0xff] 0.0
    %46 = vst [vmem:[#allocation4] sm:$0xff] 0.0
  $region53: #{sentiment_forward.1} parent=0 // pred_fallthru
    _
  %v47 = vld [vmem:[%s0] sm:$0xf]
  %v48 = vld [vmem:[%s0 + $0x4] sm:$0xf]
  %v49 = vld [vmem:[%s0 + $0x8] sm:$0xf]
  %v50 = vld [vmem:[%s0 + $0xc] sm:$0xf]
  %v51 = vld [vmem:[%s0 + $0x10] sm:$0xf]
  %v52 = vld [vmem:[%s0 + $0x14] sm:$0xf]
  %v53 = vld [vmem:[%s0 + $0x18] sm:$0xf]
  %v54 = vld [vmem:[%s0 + $0x1c] sm:$0xf]
  %v55 = vld [vmem:[%s1] sm:$0xff]
  %v56 = vld [vmem:[%s1 + $0x8] sm:$0xff]
  %v57 = vld [vmem:[%s1 + $0x10] sm:$0xff]
  %v58 = vld [vmem:[%s1 + $0x18] sm:$0xff]
  %v59 = vld [vmem:[%s1 + $0x20] sm:$0xff]
  %v60 = vld [vmem:[%s1 + $0x28] sm:$0xff]
  %v61 = vld [vmem:[%s1 + $0x30] sm:$0xff]
  %v62 = vld [vmem:[%s1 + $0x38] sm:$0xff]
  %v63 = vld [vmem:[%s1 + $0x40] sm:$0xff]
  %v64 = vld [vmem:[%s1 + $0x48] sm:$0xff]
  %v65 = vld [vmem:[%s1 + $0x50] sm:$0xff]
  %v66 = vld [vmem:[%s1 + $0x58] sm:$0xff]
  %v67 = vld [vmem:[%s1 + $0x60] sm:$0xff]
  %v68 = vld [vmem:[%s1 + $0x68] sm:$0xff]
  %v69 = vld [vmem:[%s1 + $0x70] sm:$0xff]
  %v70 = vld [vmem:[%s1 + $0x78] sm:$0xff]
  %v71 = vld [vmem:[%s1 + $0x80] sm:$0xff]
  %v72 = vld [vmem:[%s1 + $0x88] sm:$0xff]
  %v73 = vld [vmem:[%s1 + $0x90] sm:$0xff]
  %v74 = vld [vmem:[%s1 + $0x98] sm:$0xff]
  %v75 = vld [vmem:[%s1 + $0xa0] sm:$0xff]
  %v76 = vld [vmem:[%s1 + $0xa8] sm:$0xff]
  %v77 = vld [vmem:[%s1 + $0xb0] sm:$0xff]
  %v78 = vld [vmem:[%s1 + $0xb8] sm:$0xff]
  %v79 = vld [vmem:[%s1 + $0xc0] sm:$0xff]
  %v80 = vld [vmem:[%s1 + $0xc8] sm:$0xff]
  %v81 = vld [vmem:[%s1 + $0xd0] sm:$0xff]
  %v82 = vld [vmem:[%s1 + $0xd8] sm:$0xff]
  %v83 = vld [vmem:[%s1 + $0xe0] sm:$0xff]
  %v84 = vld [vmem:[%s1 + $0xe8] sm:$0xff]
  %v85 = vld [vmem:[%s1 + $0xf0] sm:$0xff]
  %v86 = vld [vmem:[%s1 + $0xf8] sm:$0xff]
  %v87 = vld [vmem:[%s3] sm:$0xf]
  %v89 = vperm.slane %v87, 0
  %v90 = vperm.slane %v87, 1
  %v91 = vperm.slane %v87, 2
  %v92 = vperm.slane %v87, 3
  %v105 = vunpack.c.l.b16 %v47
  %v106 = vunpack.c.l.b16 %v48
  %v107 = vunpack.c.l.b16 %v49
  %v108 = vunpack.c.l.b16 %v50
  %v109 = vunpack.c.l.b16 %v51
  %v110 = vunpack.c.l.b16 %v52
  %v111 = vunpack.c.l.b16 %v53
  %v112 = vunpack.c.l.b16 %v54
  %v113 = vpack.c.b16 %v106, %v105
  %v114 = vpack.c.b16 %v108, %v107
  %v115 = vpack.c.b16 %v110, %v109
  %v116 = vpack.c.b16 %v112, %v111
  %v153 = vunpack.c.l.b16 %v55
  %v154 = vunpack.c.h.b16 %v55
  %v155 = vunpack.c.l.b16 %v56
  %v156 = vunpack.c.h.b16 %v56
  %v157 = vunpack.c.l.b16 %v57
  %v158 = vunpack.c.h.b16 %v57
  %v159 = vunpack.c.l.b16 %v58
  %v160 = vunpack.c.h.b16 %v58
  %v161 = vunpack.c.l.b16 %v59
  %v162 = vunpack.c.h.b16 %v59
  %v163 = vunpack.c.l.b16 %v60
  %v164 = vunpack.c.h.b16 %v60
  %v165 = vunpack.c.l.b16 %v61
  %v166 = vunpack.c.h.b16 %v61
  %v167 = vunpack.c.l.b16 %v62
  %v168 = vunpack.c.h.b16 %v62
  %v169 = vunpack.c.l.b16 %v63
  %v170 = vunpack.c.h.b16 %v63
  %v171 = vunpack.c.l.b16 %v64
  %v172 = vunpack.c.h.b16 %v64
  %v173 = vunpack.c.l.b16 %v65
  %v174 = vunpack.c.h.b16 %v65
  %v175 = vunpack.c.l.b16 %v66
  %v176 = vunpack.c.h.b16 %v66
  %v177 = vunpack.c.l.b16 %v67
  %v178 = vunpack.c.h.b16 %v67
  %v179 = vunpack.c.l.b16 %v68
  %v180 = vunpack.c.h.b16 %v68
  %v181 = vunpack.c.l.b16 %v69
  %v182 = vunpack.c.h.b16 %v69
  %v183 = vunpack.c.l.b16 %v70
  %v184 = vunpack.c.h.b16 %v70
  %v185 = vunpack.c.l.b16 %v71
  %v186 = vunpack.c.h.b16 %v71
  %v187 = vunpack.c.l.b16 %v72
  %v188 = vunpack.c.h.b16 %v72
  %v189 = vunpack.c.l.b16 %v73
  %v190 = vunpack.c.h.b16 %v73
  %v191 = vunpack.c.l.b16 %v74
  %v192 = vunpack.c.h.b16 %v74
  %v193 = vunpack.c.l.b16 %v75
  %v194 = vunpack.c.h.b16 %v75
  %v195 = vunpack.c.l.b16 %v76
  %v196 = vunpack.c.h.b16 %v76
  %v197 = vunpack.c.l.b16 %v77
  %v198 = vunpack.c.h.b16 %v77
  %v199 = vunpack.c.l.b16 %v78
  %v200 = vunpack.c.h.b16 %v78
  %v201 = vunpack.c.l.b16 %v79
  %v202 = vunpack.c.h.b16 %v79
  %v203 = vunpack.c.l.b16 %v80
  %v204 = vunpack.c.h.b16 %v80
  %v205 = vunpack.c.l.b16 %v81
  %v206 = vunpack.c.h.b16 %v81
  %v207 = vunpack.c.l.b16 %v82
  %v208 = vunpack.c.h.b16 %v82
  %v209 = vunpack.c.l.b16 %v83
  %v210 = vunpack.c.h.b16 %v83
  %v211 = vunpack.c.l.b16 %v84
  %v212 = vunpack.c.h.b16 %v84
  %v213 = vunpack.c.l.b16 %v85
  %v214 = vunpack.c.h.b16 %v85
  %v215 = vunpack.c.l.b16 %v86
  %v216 = vunpack.c.h.b16 %v86
  %v217 = vpack.c.b16 %v157, %v153
  %v218 = vpack.c.b16 %v158, %v154
  %v219 = vpack.c.b16 %v159, %v155
  %v220 = vpack.c.b16 %v160, %v156
  %v221 = vpack.c.b16 %v165, %v161
  %v222 = vpack.c.b16 %v166, %v162
  %v223 = vpack.c.b16 %v167, %v163
  %v224 = vpack.c.b16 %v168, %v164
  %v225 = vpack.c.b16 %v173, %v169
  %v226 = vpack.c.b16 %v174, %v170
  %v227 = vpack.c.b16 %v175, %v171
  %v228 = vpack.c.b16 %v176, %v172
  %v229 = vpack.c.b16 %v181, %v177
  %v230 = vpack.c.b16 %v182, %v178
  %v231 = vpack.c.b16 %v183, %v179
  %v232 = vpack.c.b16 %v184, %v180
  %v233 = vpack.c.b16 %v189, %v185
  %v234 = vpack.c.b16 %v190, %v186
  %v235 = vpack.c.b16 %v191, %v187
  %v236 = vpack.c.b16 %v192, %v188
  %v237 = vpack.c.b16 %v197, %v193
  %v238 = vpack.c.b16 %v198, %v194
  %v239 = vpack.c.b16 %v199, %v195
  %v240 = vpack.c.b16 %v200, %v196
  %v241 = vpack.c.b16 %v205, %v201
  %v242 = vpack.c.b16 %v206, %v202
  %v243 = vpack.c.b16 %v207, %v203
  %v244 = vpack.c.b16 %v208, %v204
  %v245 = vpack.c.b16 %v213, %v209
  %v246 = vpack.c.b16 %v214, %v210
  %v247 = vpack.c.b16 %v215, %v211
  %v248 = vpack.c.b16 %v216, %v212
  %281 = vmatpush.bf16.msra.mxu0 %v245
  %282 = vmatpush.bf16.msra.mxu0 %v241
  %283 = vmatpush.bf16.msra.mxu0 %v237
  %284 = vmatpush.bf16.msra.mxu0 %v233
  %285 = vmatpush.bf16.msra.mxu0 %v229
  %286 = vmatpush.bf16.msra.mxu0 %v225
  %287 = vmatpush.bf16.msra.mxu0 %v221
  %288 = vmatpush.bf16.msra.mxu0 %v217
  %289 = vmatmul.bf16.gmra.mxu0 %v113
  %v290 = vpop.f32.mrf.mxu0
  %v291 = vadd.f32 %v89, %v290
  %v292 = vpop.f32.mrf.mxu0
  %v293 = vadd.f32 %v89, %v292
  %294 = vmatmul.bf16.gmra.mxu0 %v114
  %v295 = vpop.f32.mrf.mxu0
  %v296 = vadd.f32 %v89, %v295
  %v297 = vpop.f32.mrf.mxu0
  %v298 = vadd.f32 %v89, %v297
  %299 = vmatmul.bf16.gmra.mxu0 %v115
  %v300 = vpop.f32.mrf.mxu0
  %v301 = vadd.f32 %v89, %v300
  %v302 = vpop.f32.mrf.mxu0
  %v303 = vadd.f32 %v89, %v302
  %304 = vmatmul.bf16.gmra.mxu0 %v116
  %v305 = vpop.f32.mrf.mxu0
  %v306 = vadd.f32 %v89, %v305
  %v307 = vpop.f32.mrf.mxu0
  %v308 = vadd.f32 %v89, %v307
  %309 = vdwg.mxu0
  %310 = vmatpush.bf16.msra.mxu0 %v246
  %311 = vmatpush.bf16.msra.mxu0 %v242
  %312 = vmatpush.bf16.msra.mxu0 %v238
  %313 = vmatpush.bf16.msra.mxu0 %v234
  %314 = vmatpush.bf16.msra.mxu0 %v230
  %315 = vmatpush.bf16.msra.mxu0 %v226
  %316 = vmatpush.bf16.msra.mxu0 %v222
  %317 = vmatpush.bf16.msra.mxu0 %v218
  %318 = vmatmul.bf16.gmra.mxu0 %v113
  %v319 = vpop.f32.mrf.mxu0
  %v320 = vadd.f32 %v90, %v319
  %v321 = vpop.f32.mrf.mxu0
  %v322 = vadd.f32 %v90, %v321
  %323 = vmatmul.bf16.gmra.mxu0 %v114
  %v324 = vpop.f32.mrf.mxu0
  %v325 = vadd.f32 %v90, %v324
  %v326 = vpop.f32.mrf.mxu0
  %v327 = vadd.f32 %v90, %v326
  %328 = vmatmul.bf16.gmra.mxu0 %v115
  %v329 = vpop.f32.mrf.mxu0
  %v330 = vadd.f32 %v90, %v329
  %v331 = vpop.f32.mrf.mxu0
  %v332 = vadd.f32 %v90, %v331
  %333 = vmatmul.bf16.gmra.mxu0 %v116
  %v334 = vpop.f32.mrf.mxu0
  %v335 = vadd.f32 %v90, %v334
  %v336 = vpop.f32.mrf.mxu0
  %v337 = vadd.f32 %v90, %v336
  %338 = vdwg.mxu0
  %339 = vmatpush.bf16.msra.mxu0 %v247
  %340 = vmatpush.bf16.msra.mxu0 %v243
  %341 = vmatpush.bf16.msra.mxu0 %v239
  %342 = vmatpush.bf16.msra.mxu0 %v235
  %343 = vmatpush.bf16.msra.mxu0 %v231
  %344 = vmatpush.bf16.msra.mxu0 %v227
  %345 = vmatpush.bf16.msra.mxu0 %v223
  %346 = vmatpush.bf16.msra.mxu0 %v219
  %347 = vmatmul.bf16.gmra.mxu0 %v113
  %v348 = vpop.f32.mrf.mxu0
  %v349 = vadd.f32 %v91, %v348
  %v350 = vpop.f32.mrf.mxu0
  %v351 = vadd.f32 %v91, %v350
  %352 = vmatmul.bf16.gmra.mxu0 %v114
  %v353 = vpop.f32.mrf.mxu0
  %v354 = vadd.f32 %v91, %v353
  %v355 = vpop.f32.mrf.mxu0
  %v356 = vadd.f32 %v91, %v355
  %357 = vmatmul.bf16.gmra.mxu0 %v115
  %v358 = vpop.f32.mrf.mxu0
  %v359 = vadd.f32 %v91, %v358
  %v360 = vpop.f32.mrf.mxu0
  %v361 = vadd.f32 %v91, %v360
  %362 = vmatmul.bf16.gmra.mxu0 %v116
  %v363 = vpop.f32.mrf.mxu0
  %v364 = vadd.f32 %v91, %v363
  %v365 = vpop.f32.mrf.mxu0
  %v366 = vadd.f32 %v91, %v365
  %367 = vdwg.mxu0
  %368 = vmatpush.bf16.msra.mxu0 %v248
  %369 = vmatpush.bf16.msra.mxu0 %v244
  %370 = vmatpush.bf16.msra.mxu0 %v240
  %371 = vmatpush.bf16.msra.mxu0 %v236
  %372 = vmatpush.bf16.msra.mxu0 %v232
  %373 = vmatpush.bf16.msra.mxu0 %v228
  %374 = vmatpush.bf16.msra.mxu0 %v224
  %375 = vmatpush.bf16.msra.mxu0 %v220
  %376 = vmatmul.bf16.gmra.mxu0 %v113
  %v377 = vpop.f32.mrf.mxu0
  %v378 = vadd.f32 %v92, %v377
  %v379 = vpop.f32.mrf.mxu0
  %v380 = vadd.f32 %v92, %v379
  %381 = vmatmul.bf16.gmra.mxu0 %v114
  %v382 = vpop.f32.mrf.mxu0
  %v383 = vadd.f32 %v92, %v382
  %v384 = vpop.f32.mrf.mxu0
  %v385 = vadd.f32 %v92, %v384
  %386 = vmatmul.bf16.gmra.mxu0 %v115
  %v387 = vpop.f32.mrf.mxu0
  %v388 = vadd.f32 %v92, %v387
  %v389 = vpop.f32.mrf.mxu0
  %v390 = vadd.f32 %v92, %v389
  %391 = vmatmul.bf16.gmra.mxu0 %v116
  %v392 = vpop.f32.mrf.mxu0
  %v393 = vadd.f32 %v92, %v392
  %v394 = vpop.f32.mrf.mxu0
  %v395 = vadd.f32 %v92, %v394
  %396 = vdwg.mxu0
  %397 = vst [vmem:[#allocation2] sm:$0xff] %v291
  %398 = vst [vmem:[#allocation2 + $0x8] sm:$0xff] %v320
  %399 = vst [vmem:[#allocation2 + $0x10] sm:$0xff] %v349
  %400 = vst [vmem:[#allocation2 + $0x18] sm:$0xff] %v378
  %401 = vst [vmem:[#allocation2 + $0x20] sm:$0xff] %v293
  %402 = vst [vmem:[#allocation2 + $0x28] sm:$0xff] %v322
  %403 = vst [vmem:[#allocation2 + $0x30] sm:$0xff] %v351
  %404 = vst [vmem:[#allocation2 + $0x38] sm:$0xff] %v380
  %405 = vst [vmem:[#allocation2 + $0x40] sm:$0xff] %v296
  %406 = vst [vmem:[#allocation2 + $0x48] sm:$0xff] %v325
  %407 = vst [vmem:[#allocation2 + $0x50] sm:$0xff] %v354
  %408 = vst [vmem:[#allocation2 + $0x58] sm:$0xff] %v383
  %409 = vst [vmem:[#allocation2 + $0x60] sm:$0xff] %v298
  %410 = vst [vmem:[#allocation2 + $0x68] sm:$0xff] %v327
  %411 = vst [vmem:[#allocation2 + $0x70] sm:$0xff] %v356
  %412 = vst [vmem:[#allocation2 + $0x78] sm:$0xff] %v385
  %413 = vst [vmem:[#allocation2 + $0x80] sm:$0xff] %v301
  %414 = vst [vmem:[#allocation2 + $0x88] sm:$0xff] %v330
  %415 = vst [vmem:[#allocation2 + $0x90] sm:$0xff] %v359
  %416 = vst [vmem:[#allocation2 + $0x98] sm:$0xff] %v388
  %417 = vst [vmem:[#allocation2 + $0xa0] sm:$0xff] %v303
  %418 = vst [vmem:[#allocation2 + $0xa8] sm:$0xff] %v332
  %419 = vst [vmem:[#allocation2 + $0xb0] sm:$0xff] %v361
  %420 = vst [vmem:[#allocation2 + $0xb8] sm:$0xff] %v390
  %421 = vst [vmem:[#allocation2 + $0xc0] sm:$0xff] %v306
  %422 = vst [vmem:[#allocation2 + $0xc8] sm:$0xff] %v335
  %423 = vst [vmem:[#allocation2 + $0xd0] sm:$0xff] %v364
  %424 = vst [vmem:[#allocation2 + $0xd8] sm:$0xff] %v393
  %425 = vst [vmem:[#allocation2 + $0xe0] sm:$0xff] %v308
  %426 = vst [vmem:[#allocation2 + $0xe8] sm:$0xff] %v337
  %427 = vst [vmem:[#allocation2 + $0xf0] sm:$0xff] %v366
  %428 = vst [vmem:[#allocation2 + $0xf8] sm:$0xff] %v395
  %v429 = vld [vmem:[%s4] sm:$0xff]
  %s430 = smul.u32 0, 8
  %v431 = vld [vmem:[#allocation3] sm:$0xff]
  %v432 = vld [vmem:[#allocation4] sm:$0xff]
  %s433 = smul.u32 0, 4
  %s434 = smul.addr %s433, 8
  %s435 = scalar_lea.vmem [#allocation2], %s434
  %v436 = vld [vmem:[%s435] sm:$0xff]
  %v437 = vld [vmem:[%s435 + $0x8] sm:$0xff]
  %v438 = vld [vmem:[%s435 + $0x10] sm:$0xff]
  %v439 = vld [vmem:[%s435 + $0x18] sm:$0xff]
  %v440 = vpack.c.bf16 %v431, %v431
  %v441 = vld [vmem:[%s2] sm:$0xff]
  %v442 = vld [vmem:[%s2 + $0x8] sm:$0xff]
  %v443 = vld [vmem:[%s2 + $0x10] sm:$0xff]
  %v444 = vld [vmem:[%s2 + $0x18] sm:$0xff]
  %v445 = vld [vmem:[%s2 + $0x20] sm:$0xff]
  %v446 = vld [vmem:[%s2 + $0x28] sm:$0xff]
  %v447 = vld [vmem:[%s2 + $0x30] sm:$0xff]
  %v448 = vld [vmem:[%s2 + $0x38] sm:$0xff]
  %v449 = vld [vmem:[%s2 + $0x40] sm:$0xff]
  %v450 = vld [vmem:[%s2 + $0x48] sm:$0xff]
  %v451 = vld [vmem:[%s2 + $0x50] sm:$0xff]
  %v452 = vld [vmem:[%s2 + $0x58] sm:$0xff]
  %v453 = vld [vmem:[%s2 + $0x60] sm:$0xff]
  %v454 = vld [vmem:[%s2 + $0x68] sm:$0xff]
  %v455 = vld [vmem:[%s2 + $0x70] sm:$0xff]
  %v456 = vld [vmem:[%s2 + $0x78] sm:$0xff]
  %v457 = vld [vmem:[%s2 + $0x80] sm:$0xff]
  %v458 = vld [vmem:[%s2 + $0x88] sm:$0xff]
  %v459 = vld [vmem:[%s2 + $0x90] sm:$0xff]
  %v460 = vld [vmem:[%s2 + $0x98] sm:$0xff]
  %v461 = vld [vmem:[%s2 + $0xa0] sm:$0xff]
  %v462 = vld [vmem:[%s2 + $0xa8] sm:$0xff]
  %v463 = vld [vmem:[%s2 + $0xb0] sm:$0xff]
  %v464 = vld [vmem:[%s2 + $0xb8] sm:$0xff]
  %v465 = vld [vmem:[%s2 + $0xc0] sm:$0xff]
  %v466 = vld [vmem:[%s2 + $0xc8] sm:$0xff]
  %v467 = vld [vmem:[%s2 + $0xd0] sm:$0xff]
  %v468 = vld [vmem:[%s2 + $0xd8] sm:$0xff]
  %v469 = vld [vmem:[%s2 + $0xe0] sm:$0xff]
  %v470 = vld [vmem:[%s2 + $0xe8] sm:$0xff]
  %v471 = vld [vmem:[%s2 + $0xf0] sm:$0xff]
  %v472 = vld [vmem:[%s2 + $0xf8] sm:$0xff]
  %v505 = vunpack.c.l.b16 %v441
  %v506 = vunpack.c.h.b16 %v441
  %v507 = vunpack.c.l.b16 %v442
  %v508 = vunpack.c.h.b16 %v442
  %v509 = vunpack.c.l.b16 %v443
  %v510 = vunpack.c.h.b16 %v443
  %v511 = vunpack.c.l.b16 %v444
  %v512 = vunpack.c.h.b16 %v444
  %v513 = vunpack.c.l.b16 %v445
  %v514 = vunpack.c.h.b16 %v445
  %v515 = vunpack.c.l.b16 %v446
  %v516 = vunpack.c.h.b16 %v446
  %v517 = vunpack.c.l.b16 %v447
  %v518 = vunpack.c.h.b16 %v447
  %v519 = vunpack.c.l.b16 %v448
  %v520 = vunpack.c.h.b16 %v448
  %v521 = vunpack.c.l.b16 %v449
  %v522 = vunpack.c.h.b16 %v449
  %v523 = vunpack.c.l.b16 %v450
  %v524 = vunpack.c.h.b16 %v450
  %v525 = vunpack.c.l.b16 %v451
  %v526 = vunpack.c.h.b16 %v451
  %v527 = vunpack.c.l.b16 %v452
  %v528 = vunpack.c.h.b16 %v452
  %v529 = vunpack.c.l.b16 %v453
  %v530 = vunpack.c.h.b16 %v453
  %v531 = vunpack.c.l.b16 %v454
  %v532 = vunpack.c.h.b16 %v454
  %v533 = vunpack.c.l.b16 %v455
  %v534 = vunpack.c.h.b16 %v455
  %v535 = vunpack.c.l.b16 %v456
  %v536 = vunpack.c.h.b16 %v456
  %v537 = vunpack.c.l.b16 %v457
  %v538 = vunpack.c.h.b16 %v457
  %v539 = vunpack.c.l.b16 %v458
  %v540 = vunpack.c.h.b16 %v458
  %v541 = vunpack.c.l.b16 %v459
  %v542 = vunpack.c.h.b16 %v459
  %v543 = vunpack.c.l.b16 %v460
  %v544 = vunpack.c.h.b16 %v460
  %v545 = vunpack.c.l.b16 %v461
  %v546 = vunpack.c.h.b16 %v461
  %v547 = vunpack.c.l.b16 %v462
  %v548 = vunpack.c.h.b16 %v462
  %v549 = vunpack.c.l.b16 %v463
  %v550 = vunpack.c.h.b16 %v463
  %v551 = vunpack.c.l.b16 %v464
  %v552 = vunpack.c.h.b16 %v464
  %v553 = vunpack.c.l.b16 %v465
  %v554 = vunpack.c.h.b16 %v465
  %v555 = vunpack.c.l.b16 %v466
  %v556 = vunpack.c.h.b16 %v466
  %v557 = vunpack.c.l.b16 %v467
  %v558 = vunpack.c.h.b16 %v467
  %v559 = vunpack.c.l.b16 %v468
  %v560 = vunpack.c.h.b16 %v468
  %v561 = vunpack.c.l.b16 %v469
  %v562 = vunpack.c.h.b16 %v469
  %v563 = vunpack.c.l.b16 %v470
  %v564 = vunpack.c.h.b16 %v470
  %v565 = vunpack.c.l.b16 %v471
  %v566 = vunpack.c.h.b16 %v471
  %v567 = vunpack.c.l.b16 %v472
  %v568 = vunpack.c.h.b16 %v472
  %v569 = vpack.c.b16 %v509, %v505
  %v570 = vpack.c.b16 %v510, %v506
  %v571 = vpack.c.b16 %v511, %v507
  %v572 = vpack.c.b16 %v512, %v508
  %v573 = vpack.c.b16 %v517, %v513
  %v574 = vpack.c.b16 %v518, %v514
  %v575 = vpack.c.b16 %v519, %v515
  %v576 = vpack.c.b16 %v520, %v516
  %v577 = vpack.c.b16 %v525, %v521
  %v578 = vpack.c.b16 %v526, %v522
  %v579 = vpack.c.b16 %v527, %v523
  %v580 = vpack.c.b16 %v528, %v524
  %v581 = vpack.c.b16 %v533, %v529
  %v582 = vpack.c.b16 %v534, %v530
  %v583 = vpack.c.b16 %v535, %v531
  %v584 = vpack.c.b16 %v536, %v532
  %v585 = vpack.c.b16 %v541, %v537
  %v586 = vpack.c.b16 %v542, %v538
  %v587 = vpack.c.b16 %v543, %v539
  %v588 = vpack.c.b16 %v544, %v540
  %v589 = vpack.c.b16 %v549, %v545
  %v590 = vpack.c.b16 %v550, %v546
  %v591 = vpack.c.b16 %v551, %v547
  %v592 = vpack.c.b16 %v552, %v548
  %v593 = vpack.c.b16 %v557, %v553
  %v594 = vpack.c.b16 %v558, %v554
  %v595 = vpack.c.b16 %v559, %v555
  %v596 = vpack.c.b16 %v560, %v556
  %v597 = vpack.c.b16 %v565, %v561
  %v598 = vpack.c.b16 %v566, %v562
  %v599 = vpack.c.b16 %v567, %v563
  %v600 = vpack.c.b16 %v568, %v564
  %633 = vmatpush.bf16.msra.mxu0 %v597
  %634 = vmatpush.bf16.msra.mxu0 %v593
  %635 = vmatpush.bf16.msra.mxu0 %v589
  %636 = vmatpush.bf16.msra.mxu0 %v585
  %637 = vmatpush.bf16.msra.mxu0 %v581
  %638 = vmatpush.bf16.msra.mxu0 %v577
  %639 = vmatpush.bf16.msra.mxu0 %v573
  %640 = vmatpush.bf16.msra.mxu0 %v569
  %641 = vmatmul.bf16.gmra.mxu0 %v440
  %v642 = vpop.f32.mrf.mxu0
  %v643 = vadd.f32 0.0, %v642
  %v644 = vpop.f32.mrf.mxu0
  %645 = vdwg.mxu0
  %646 = vmatpush.bf16.msra.mxu0 %v598
  %647 = vmatpush.bf16.msra.mxu0 %v594
  %648 = vmatpush.bf16.msra.mxu0 %v590
  %649 = vmatpush.bf16.msra.mxu0 %v586
  %650 = vmatpush.bf16.msra.mxu0 %v582
  %651 = vmatpush.bf16.msra.mxu0 %v578
  %652 = vmatpush.bf16.msra.mxu0 %v574
  %653 = vmatpush.bf16.msra.mxu0 %v570
  %654 = vmatmul.bf16.gmra.mxu0 %v440
  %v655 = vpop.f32.mrf.mxu0
  %v656 = vadd.f32 0.0, %v655
  %v657 = vpop.f32.mrf.mxu0
  %658 = vdwg.mxu0
  %659 = vmatpush.bf16.msra.mxu0 %v599
  %660 = vmatpush.bf16.msra.mxu0 %v595
  %661 = vmatpush.bf16.msra.mxu0 %v591
  %662 = vmatpush.bf16.msra.mxu0 %v587
  %663 = vmatpush.bf16.msra.mxu0 %v583
  %664 = vmatpush.bf16.msra.mxu0 %v579
  %665 = vmatpush.bf16.msra.mxu0 %v575
  %666 = vmatpush.bf16.msra.mxu0 %v571
  %667 = vmatmul.bf16.gmra.mxu0 %v440
  %v668 = vpop.f32.mrf.mxu0
  %v669 = vadd.f32 0.0, %v668
  %v670 = vpop.f32.mrf.mxu0
  %671 = vdwg.mxu0
  %672 = vmatpush.bf16.msra.mxu0 %v600
  %673 = vmatpush.bf16.msra.mxu0 %v596
  %674 = vmatpush.bf16.msra.mxu0 %v592
  %675 = vmatpush.bf16.msra.mxu0 %v588
  %676 = vmatpush.bf16.msra.mxu0 %v584
  %677 = vmatpush.bf16.msra.mxu0 %v580
  %678 = vmatpush.bf16.msra.mxu0 %v576
  %679 = vmatpush.bf16.msra.mxu0 %v572
  %680 = vmatmul.bf16.gmra.mxu0 %v440
  %v681 = vpop.f32.mrf.mxu0
  %v682 = vadd.f32 0.0, %v681
  %v683 = vpop.f32.mrf.mxu0
  %684 = vdwg.mxu0
  %v685 = vadd.f32 %v436, %v643
  %v686 = vadd.f32 %v437, %v656
  %v687 = vadd.f32 %v438, %v669
  %v688 = vadd.f32 %v439, %v682
  %v689 = vmul.f32 %v685, 0.5
  %v690 = vmul.f32 %v686, 0.5
  %v691 = vmul.f32 %v687, 0.5
  %v692 = vtanh.pop %v689
  %v693 = vtanh.pop %v690
  %v694 = vtanh.pop %v691
  %v695 = vadd.f32 %v692, 1.0
  %v696 = vadd.f32 %v693, 1.0
  %v697 = vadd.f32 %v694, 1.0
  %v698 = vmul.f32 %v695, 0.5
  %v699 = vmul.f32 %v696, 0.5
  %v700 = vmul.f32 %v697, 0.5
  %v701 = vtanh.pop %v688
  %v702 = vmul.f32 %v699, %v432
  %v703 = vmul.f32 %v698, %v701
  %v704 = vadd.f32 %v702, %v703
  %v705 = vtanh.pop %v704
  %v706 = vmul.f32 %v700, %v705
  %v707 = vstv %s430
  %vm708 = vcmp.lt.s32.totalorder %v707, %v429
  %v709 = vsel %vm708, %v706, %v431
  %v710 = vsel %vm708, %v704, %v432
  %s711 = smul.u32 1, 4
  %s712 = smul.addr %s711, 8
  %s713 = scalar_lea.vmem [#allocation2], %s712
  %v714 = vld [vmem:[%s713] sm:$0xff]
  %v715 = vld [vmem:[%s713 + $0x8] sm:$0xff]
  %v716 = vld [vmem:[%s713 + $0x10] sm:$0xff]
  %v717 = vld [vmem:[%s713 + $0x18] sm:$0xff]
  %v718 = vpack.c.bf16 %v709, %v709
  %719 = vmatpush.bf16.msra.mxu0 %v597
  %720 = vmatpush.bf16.msra.mxu0 %v593
  %721 = vmatpush.bf16.msra.mxu0 %v589
  %722 = vmatpush.bf16.msra.mxu0 %v585
  %723 = vmatpush.bf16.msra.mxu0 %v581
  %724 = vmatpush.bf16.msra.mxu0 %v577
  %725 = vmatpush.bf16.msra.mxu0 %v573
  %726 = vmatpush.bf16.msra.mxu0 %v569
  %727 = vmatmul.bf16.gmra.mxu0 %v718
  %v728 = vpop.f32.mrf.mxu0
  %v729 = vadd.f32 0.0, %v728
  %v730 = vpop.f32.mrf.mxu0
  %731 = vdwg.mxu0
  %732 = vmatpush.bf16.msra.mxu0 %v598
  %733 = vmatpush.bf16.msra.mxu0 %v594
  %734 = vmatpush.bf16.msra.mxu0 %v590
  %735 = vmatpush.bf16.msra.mxu0 %v586
  %736 = vmatpush.bf16.msra.mxu0 %v582
  %737 = vmatpush.bf16.msra.mxu0 %v578
  %738 = vmatpush.bf16.msra.mxu0 %v574
  %739 = vmatpush.bf16.msra.mxu0 %v570
  %740 = vmatmul.bf16.gmra.mxu0 %v718
  %v741 = vpop.f32.mrf.mxu0
  %v742 = vadd.f32 0.0, %v741
  %v743 = vpop.f32.mrf.mxu0
  %744 = vdwg.mxu0
  %745 = vmatpush.bf16.msra.mxu0 %v599
  %746 = vmatpush.bf16.msra.mxu0 %v595
  %747 = vmatpush.bf16.msra.mxu0 %v591
  %748 = vmatpush.bf16.msra.mxu0 %v587
  %749 = vmatpush.bf16.msra.mxu0 %v583
  %750 = vmatpush.bf16.msra.mxu0 %v579
  %751 = vmatpush.bf16.msra.mxu0 %v575
  %752 = vmatpush.bf16.msra.mxu0 %v571
  %753 = vmatmul.bf16.gmra.mxu0 %v718
  %v754 = vpop.f32.mrf.mxu0
  %v755 = vadd.f32 0.0, %v754
  %v756 = vpop.f32.mrf.mxu0
  %757 = vdwg.mxu0
  %758 = vmatpush.bf16.msra.mxu0 %v600
  %759 = vmatpush.bf16.msra.mxu0 %v596
  %760 = vmatpush.bf16.msra.mxu0 %v592
  %761 = vmatpush.bf16.msra.mxu0 %v588
  %762 = vmatpush.bf16.msra.mxu0 %v584
  %763 = vmatpush.bf16.msra.mxu0 %v580
  %764 = vmatpush.bf16.msra.mxu0 %v576
  %765 = vmatpush.bf16.msra.mxu0 %v572
  %766 = vmatmul.bf16.gmra.mxu0 %v718
  %v767 = vpop.f32.mrf.mxu0
  %v768 = vadd.f32 0.0, %v767
  %v769 = vpop.f32.mrf.mxu0
  %770 = vdwg.mxu0
  %v771 = vadd.f32 %v714, %v729
  %v772 = vadd.f32 %v715, %v742
  %v773 = vadd.f32 %v716, %v755
  %v774 = vadd.f32 %v717, %v768
  %v775 = vmul.f32 %v771, 0.5
  %v776 = vmul.f32 %v772, 0.5
  %v777 = vmul.f32 %v773, 0.5
  %v778 = vtanh.pop %v775
  %v779 = vtanh.pop %v776
  %v780 = vtanh.pop %v777
  %v781 = vadd.f32 %v778, 1.0
  %v782 = vadd.f32 %v779, 1.0
  %v783 = vadd.f32 %v780, 1.0
  %v784 = vmul.f32 %v781, 0.5
  %v785 = vmul.f32 %v782, 0.5
  %v786 = vmul.f32 %v783, 0.5
  %v787 = vtanh.pop %v774
  %v788 = vmul.f32 %v785, %v710
  %v789 = vmul.f32 %v784, %v787
  %v790 = vadd.f32 %v788, %v789
  %v791 = vtanh.pop %v790
  %v792 = vmul.f32 %v786, %v791
  %s793 = sadd.s32 %s430, 1
  %v794 = vstv %s793
  %vm795 = vcmp.lt.s32.totalorder %v794, %v429
  %v796 = vsel %vm795, %v792, %v709
  %v797 = vsel %vm795, %v790, %v710
  %s798 = smul.u32 2, 4
  %s799 = smul.addr %s798, 8
  %s800 = scalar_lea.vmem [#allocation2], %s799
  %v801 = vld [vmem:[%s800] sm:$0xff]
  %v802 = vld [vmem:[%s800 + $0x8] sm:$0xff]
  %v803 = vld [vmem:[%s800 + $0x10] sm:$0xff]
  %v804 = vld [vmem:[%s800 + $0x18] sm:$0xff]
  %v805 = vpack.c.bf16 %v796, %v796
  %806 = vmatpush.bf16.msra.mxu0 %v597
  %807 = vmatpush.bf16.msra.mxu0 %v593
  %808 = vmatpush.bf16.msra.mxu0 %v589
  %809 = vmatpush.bf16.msra.mxu0 %v585
  %810 = vmatpush.bf16.msra.mxu0 %v581
  %811 = vmatpush.bf16.msra.mxu0 %v577
  %812 = vmatpush.bf16.msra.mxu0 %v573
  %813 = vmatpush.bf16.msra.mxu0 %v569
  %814 = vmatmul.bf16.gmra.mxu0 %v805
  %v815 = vpop.f32.mrf.mxu0
  %v816 = vadd.f32 0.0, %v815
  %v817 = vpop.f32.mrf.mxu0
  %818 = vdwg.mxu0
  %819 = vmatpush.bf16.msra.mxu0 %v598
  %820 = vmatpush.bf16.msra.mxu0 %v594
  %821 = vmatpush.bf16.msra.mxu0 %v590
  %822 = vmatpush.bf16.msra.mxu0 %v586
  %823 = vmatpush.bf16.msra.mxu0 %v582
  %824 = vmatpush.bf16.msra.mxu0 %v578
  %825 = vmatpush.bf16.msra.mxu0 %v574
  %826 = vmatpush.bf16.msra.mxu0 %v570
  %827 = vmatmul.bf16.gmra.mxu0 %v805
  %v828 = vpop.f32.mrf.mxu0
  %v829 = vadd.f32 0.0, %v828
  %v830 = vpop.f32.mrf.mxu0
  %831 = vdwg.mxu0
  %832 = vmatpush.bf16.msra.mxu0 %v599
  %833 = vmatpush.bf16.msra.mxu0 %v595
  %834 = vmatpush.bf16.msra.mxu0 %v591
  %835 = vmatpush.bf16.msra.mxu0 %v587
  %836 = vmatpush.bf16.msra.mxu0 %v583
  %837 = vmatpush.bf16.msra.mxu0 %v579
  %838 = vmatpush.bf16.msra.mxu0 %v575
  %839 = vmatpush.bf16.msra.mxu0 %v571
  %840 = vmatmul.bf16.gmra.mxu0 %v805
  %v841 = vpop.f32.mrf.mxu0
  %v842 = vadd.f32 0.0, %v841
  %v843 = vpop.f32.mrf.mxu0
  %844 = vdwg.mxu0
  %845 = vmatpush.bf16.msra.mxu0 %v600
  %846 = vmatpush.bf16.msra.mxu0 %v596
  %847 = vmatpush.bf16.msra.mxu0 %v592
  %848 = vmatpush.bf16.msra.mxu0 %v588
  %849 = vmatpush.bf16.msra.mxu0 %v584
  %850 = vmatpush.bf16.msra.mxu0 %v580
  %851 = vmatpush.bf16.msra.mxu0 %v576
  %852 = vmatpush.bf16.msra.mxu0 %v572
  %853 = vmatmul.bf16.gmra.mxu0 %v805
  %v854 = vpop.f32.mrf.mxu0
  %v855 = vadd.f32 0.0, %v854
  %v856 = vpop.f32.mrf.mxu0
  %857 = vdwg.mxu0
  %v858 = vadd.f32 %v801, %v816
  %v859 = vadd.f32 %v802, %v829
  %v860 = vadd.f32 %v803, %v842
  %v861 = vadd.f32 %v804, %v855
  %v862 = vmul.f32 %v858, 0.5
  %v863 = vmul.f32 %v859, 0.5
  %v864 = vmul.f32 %v860, 0.5
  %v865 = vtanh.pop %v862
  %v866 = vtanh.pop %v863
  %v867 = vtanh.pop %v864
  %v868 = vadd.f32 %v865, 1.0
  %v869 = vadd.f32 %v866, 1.0
  %v870 = vadd.f32 %v867, 1.0
  %v871 = vmul.f32 %v868, 0.5
  %v872 = vmul.f32 %v869, 0.5
  %v873 = vmul.f32 %v870, 0.5
  %v874 = vtanh.pop %v861
  %v875 = vmul.f32 %v872, %v797
  %v876 = vmul.f32 %v871, %v874
  %v877 = vadd.f32 %v875, %v876
  %v878 = vtanh.pop %v877
  %v879 = vmul.f32 %v873, %v878
  %s880 = sadd.s32 %s430, 2
  %v881 = vstv %s880
  %vm882 = vcmp.lt.s32.totalorder %v881, %v429
  %v883 = vsel %vm882, %v879, %v796
  %v884 = vsel %vm882, %v877, %v797
  %s885 = smul.u32 3, 4
  %s886 = smul.addr %s885, 8
  %s887 = scalar_lea.vmem [#allocation2], %s886
  %v888 = vld [vmem:[%s887] sm:$0xff]
  %v889 = vld [vmem:[%s887 + $0x8] sm:$0xff]
  %v890 = vld [vmem:[%s887 + $0x10] sm:$0xff]
  %v891 = vld [vmem:[%s887 + $0x18] sm:$0xff]
  %v892 = vpack.c.bf16 %v883, %v883
  %893 = vmatpush.bf16.msra.mxu0 %v597
  %894 = vmatpush.bf16.msra.mxu0 %v593
  %895 = vmatpush.bf16.msra.mxu0 %v589
  %896 = vmatpush.bf16.msra.mxu0 %v585
  %897 = vmatpush.bf16.msra.mxu0 %v581
  %898 = vmatpush.bf16.msra.mxu0 %v577
  %899 = vmatpush.bf16.msra.mxu0 %v573
  %900 = vmatpush.bf16.msra.mxu0 %v569
  %901 = vmatmul.bf16.gmra.mxu0 %v892
  %v902 = vpop.f32.mrf.mxu0
  %v903 = vadd.f32 0.0, %v902
  %v904 = vpop.f32.mrf.mxu0
  %905 = vdwg.mxu0
  %906 = vmatpush.bf16.msra.mxu0 %v598
  %907 = vmatpush.bf16.msra.mxu0 %v594
  %908 = vmatpush.bf16.msra.mxu0 %v590
  %909 = vmatpush.bf16.msra.mxu0 %v586
  %910 = vmatpush.bf16.msra.mxu0 %v582
  %911 = vmatpush.bf16.msra.mxu0 %v578
  %912 = vmatpush.bf16.msra.mxu0 %v574
  %913 = vmatpush.bf16.msra.mxu0 %v570
  %914 = vmatmul.bf16.gmra.mxu0 %v892
  %v915 = vpop.f32.mrf.mxu0
  %v916 = vadd.f32 0.0, %v915
  %v917 = vpop.f32.mrf.mxu0
  %918 = vdwg.mxu0
  %919 = vmatpush.bf16.msra.mxu0 %v599
  %920 = vmatpush.bf16.msra.mxu0 %v595
  %921 = vmatpush.bf16.msra.mxu0 %v591
  %922 = vmatpush.bf16.msra.mxu0 %v587
  %923 = vmatpush.bf16.msra.mxu0 %v583
  %924 = vmatpush.bf16.msra.mxu0 %v579
  %925 = vmatpush.bf16.msra.mxu0 %v575
  %926 = vmatpush.bf16.msra.mxu0 %v571
  %927 = vmatmul.bf16.gmra.mxu0 %v892
  %v928 = vpop.f32.mrf.mxu0
  %v929 = vadd.f32 0.0, %v928
  %v930 = vpop.f32.mrf.mxu0
  %931 = vdwg.mxu0
  %932 = vmatpush.bf16.msra.mxu0 %v600
  %933 = vmatpush.bf16.msra.mxu0 %v596
  %934 = vmatpush.bf16.msra.mxu0 %v592
  %935 = vmatpush.bf16.msra.mxu0 %v588
  %936 = vmatpush.bf16.msra.mxu0 %v584
  %937 = vmatpush.bf16.msra.mxu0 %v580
  %938 = vmatpush.bf16.msra.mxu0 %v576
  %939 = vmatpush.bf16.msra.mxu0 %v572
  %940 = vmatmul.bf16.gmra.mxu0 %v892
  %v941 = vpop.f32.mrf.mxu0
  %v942 = vadd.f32 0.0, %v941
  %v943 = vpop.f32.mrf.mxu0
  %944 = vdwg.mxu0
  %v945 = vadd.f32 %v888, %v903
  %v946 = vadd.f32 %v889, %v916
  %v947 = vadd.f32 %v890, %v929
  %v948 = vadd.f32 %v891, %v942
  %v949 = vmul.f32 %v945, 0.5
  %v950 = vmul.f32 %v946, 0.5
  %v951 = vmul.f32 %v947, 0.5
  %v952 = vtanh.pop %v949
  %v953 = vtanh.pop %v950
  %v954 = vtanh.pop %v951
  %v955 = vadd.f32 %v952, 1.0
  %v956 = vadd.f32 %v953, 1.0
  %v957 = vadd.f32 %v954, 1.0
  %v958 = vmul.f32 %v955, 0.5
  %v959 = vmul.f32 %v956, 0.5
  %v960 = vmul.f32 %v957, 0.5
  %v961 = vtanh.pop %v948
  %v962 = vmul.f32 %v959, %v884
  %v963 = vmul.f32 %v958, %v961
  %v964 = vadd.f32 %v962, %v963
  %v965 = vtanh.pop %v964
  %v966 = vmul.f32 %v960, %v965
  %s967 = sadd.s32 %s430, 3
  %v968 = vstv %s967
  %vm969 = vcmp.lt.s32.totalorder %v968, %v429
  %v970 = vsel %vm969, %v966, %v883
  %v971 = vsel %vm969, %v964, %v884
  %s972 = smul.u32 4, 4
  %s973 = smul.addr %s972, 8
  %s974 = scalar_lea.vmem [#allocation2], %s973
  %v975 = vld [vmem:[%s974] sm:$0xff]
  %v976 = vld [vmem:[%s974 + $0x8] sm:$0xff]
  %v977 = vld [vmem:[%s974 + $0x10] sm:$0xff]
  %v978 = vld [vmem:[%s974 + $0x18] sm:$0xff]
  %v979 = vpack.c.bf16 %v970, %v970
  %980 = vmatpush.bf16.msra.mxu0 %v597
  %981 = vmatpush.bf16.msra.mxu0 %v593
  %982 = vmatpush.bf16.msra.mxu0 %v589
  %983 = vmatpush.bf16.msra.mxu0 %v585
  %984 = vmatpush.bf16.msra.mxu0 %v581
  %985 = vmatpush.bf16.msra.mxu0 %v577
  %986 = vmatpush.bf16.msra.mxu0 %v573
  %987 = vmatpush.bf16.msra.mxu0 %v569
  %988 = vmatmul.bf16.gmra.mxu0 %v979
  %v989 = vpop.f32.mrf.mxu0
  %v990 = vadd.f32 0.0, %v989
  %v991 = vpop.f32.mrf.mxu0
  %992 = vdwg.mxu0
  %993 = vmatpush.bf16.msra.mxu0 %v598
  %994 = vmatpush.bf16.msra.mxu0 %v594
  %995 = vmatpush.bf16.msra.mxu0 %v590
  %996 = vmatpush.bf16.msra.mxu0 %v586
  %997 = vmatpush.bf16.msra.mxu0 %v582
  %998 = vmatpush.bf16.msra.mxu0 %v578
  %999 = vmatpush.bf16.msra.mxu0 %v574
  %1000 = vmatpush.bf16.msra.mxu0 %v570
  %1001 = vmatmul.bf16.gmra.mxu0 %v979
  %v1002 = vpop.f32.mrf.mxu0
  %v1003 = vadd.f32 0.0, %v1002
  %v1004 = vpop.f32.mrf.mxu0
  %1005 = vdwg.mxu0
  %1006 = vmatpush.bf16.msra.mxu0 %v599
  %1007 = vmatpush.bf16.msra.mxu0 %v595
  %1008 = vmatpush.bf16.msra.mxu0 %v591
  %1009 = vmatpush.bf16.msra.mxu0 %v587
  %1010 = vmatpush.bf16.msra.mxu0 %v583
  %1011 = vmatpush.bf16.msra.mxu0 %v579
  %1012 = vmatpush.bf16.msra.mxu0 %v575
  %1013 = vmatpush.bf16.msra.mxu0 %v571
  %1014 = vmatmul.bf16.gmra.mxu0 %v979
  %v1015 = vpop.f32.mrf.mxu0
  %v1016 = vadd.f32 0.0, %v1015
  %v1017 = vpop.f32.mrf.mxu0
  %1018 = vdwg.mxu0
  %1019 = vmatpush.bf16.msra.mxu0 %v600
  %1020 = vmatpush.bf16.msra.mxu0 %v596
  %1021 = vmatpush.bf16.msra.mxu0 %v592
  %1022 = vmatpush.bf16.msra.mxu0 %v588
  %1023 = vmatpush.bf16.msra.mxu0 %v584
  %1024 = vmatpush.bf16.msra.mxu0 %v580
  %1025 = vmatpush.bf16.msra.mxu0 %v576
  %1026 = vmatpush.bf16.msra.mxu0 %v572
  %1027 = vmatmul.bf16.gmra.mxu0 %v979
  %v1028 = vpop.f32.mrf.mxu0
  %v1029 = vadd.f32 0.0, %v1028
  %v1030 = vpop.f32.mrf.mxu0
  %1031 = vdwg.mxu0
  %v1032 = vadd.f32 %v975, %v990
  %v1033 = vadd.f32 %v976, %v1003
  %v1034 = vadd.f32 %v977, %v1016
  %v1035 = vadd.f32 %v978, %v1029
  %v1036 = vmul.f32 %v1032, 0.5
  %v1037 = vmul.f32 %v1033, 0.5
  %v1038 = vmul.f32 %v1034, 0.5
  %v1039 = vtanh.pop %v1036
  %v1040 = vtanh.pop %v1037
  %v1041 = vtanh.pop %v1038
  %v1042 = vadd.f32 %v1039, 1.0
  %v1043 = vadd.f32 %v1040, 1.0
  %v1044 = vadd.f32 %v1041, 1.0
  %v1045 = vmul.f32 %v1042, 0.5
  %v1046 = vmul.f32 %v1043, 0.5
  %v1047 = vmul.f32 %v1044, 0.5
  %v1048 = vtanh.pop %v1035
  %v1049 = vmul.f32 %v1046, %v971
  %v1050 = vmul.f32 %v1045, %v1048
  %v1051 = vadd.f32 %v1049, %v1050
  %v1052 = vtanh.pop %v1051
  %v1053 = vmul.f32 %v1047, %v1052
  %s1054 = sadd.s32 %s430, 4
  %v1055 = vstv %s1054
  %vm1056 = vcmp.lt.s32.totalorder %v1055, %v429
  %v1057 = vsel %vm1056, %v1053, %v970
  %v1058 = vsel %vm1056, %v1051, %v971
  %s1059 = smul.u32 5, 4
  %s1060 = smul.addr %s1059, 8
  %s1061 = scalar_lea.vmem [#allocation2], %s1060
  %v1062 = vld [vmem:[%s1061] sm:$0xff]
  %v1063 = vld [vmem:[%s1061 + $0x8] sm:$0xff]
  %v1064 = vld [vmem:[%s1061 + $0x10] sm:$0xff]
  %v1065 = vld [vmem:[%s1061 + $0x18] sm:$0xff]
  %v1066 = vpack.c.bf16 %v1057, %v1057
  %1067 = vmatpush.bf16.msra.mxu0 %v597
  %1068 = vmatpush.bf16.msra.mxu0 %v593
  %1069 = vmatpush.bf16.msra.mxu0 %v589
  %1070 = vmatpush.bf16.msra.mxu0 %v585
  %1071 = vmatpush.bf16.msra.mxu0 %v581
  %1072 = vmatpush.bf16.msra.mxu0 %v577
  %1073 = vmatpush.bf16.msra.mxu0 %v573
  %1074 = vmatpush.bf16.msra.mxu0 %v569
  %1075 = vmatmul.bf16.gmra.mxu0 %v1066
  %v1076 = vpop.f32.mrf.mxu0
  %v1077 = vadd.f32 0.0, %v1076
  %v1078 = vpop.f32.mrf.mxu0
  %1079 = vdwg.mxu0
  %1080 = vmatpush.bf16.msra.mxu0 %v598
  %1081 = vmatpush.bf16.msra.mxu0 %v594
  %1082 = vmatpush.bf16.msra.mxu0 %v590
  %1083 = vmatpush.bf16.msra.mxu0 %v586
  %1084 = vmatpush.bf16.msra.mxu0 %v582
  %1085 = vmatpush.bf16.msra.mxu0 %v578
  %1086 = vmatpush.bf16.msra.mxu0 %v574
  %1087 = vmatpush.bf16.msra.mxu0 %v570
  %1088 = vmatmul.bf16.gmra.mxu0 %v1066
  %v1089 = vpop.f32.mrf.mxu0
  %v1090 = vadd.f32 0.0, %v1089
  %v1091 = vpop.f32.mrf.mxu0
  %1092 = vdwg.mxu0
  %1093 = vmatpush.bf16.msra.mxu0 %v599
  %1094 = vmatpush.bf16.msra.mxu0 %v595
  %1095 = vmatpush.bf16.msra.mxu0 %v591
  %1096 = vmatpush.bf16.msra.mxu0 %v587
  %1097 = vmatpush.bf16.msra.mxu0 %v583
  %1098 = vmatpush.bf16.msra.mxu0 %v579
  %1099 = vmatpush.bf16.msra.mxu0 %v575
  %1100 = vmatpush.bf16.msra.mxu0 %v571
  %1101 = vmatmul.bf16.gmra.mxu0 %v1066
  %v1102 = vpop.f32.mrf.mxu0
  %v1103 = vadd.f32 0.0, %v1102
  %v1104 = vpop.f32.mrf.mxu0
  %1105 = vdwg.mxu0
  %1106 = vmatpush.bf16.msra.mxu0 %v600
  %1107 = vmatpush.bf16.msra.mxu0 %v596
  %1108 = vmatpush.bf16.msra.mxu0 %v592
  %1109 = vmatpush.bf16.msra.mxu0 %v588
  %1110 = vmatpush.bf16.msra.mxu0 %v584
  %1111 = vmatpush.bf16.msra.mxu0 %v580
  %1112 = vmatpush.bf16.msra.mxu0 %v576
  %1113 = vmatpush.bf16.msra.mxu0 %v572
  %1114 = vmatmul.bf16.gmra.mxu0 %v1066
  %v1115 = vpop.f32.mrf.mxu0
  %v1116 = vadd.f32 0.0, %v1115
  %v1117 = vpop.f32.mrf.mxu0
  %1118 = vdwg.mxu0
  %v1119 = vadd.f32 %v1062, %v1077
  %v1120 = vadd.f32 %v1063, %v1090
  %v1121 = vadd.f32 %v1064, %v1103
  %v1122 = vadd.f32 %v1065, %v1116
  %v1123 = vmul.f32 %v1119, 0.5
  %v1124 = vmul.f32 %v1120, 0.5
  %v1125 = vmul.f32 %v1121, 0.5
  %v1126 = vtanh.pop %v1123
  %v1127 = vtanh.pop %v1124
  %v1128 = vtanh.pop %v1125
  %v1129 = vadd.f32 %v1126, 1.0
  %v1130 = vadd.f32 %v1127, 1.0
  %v1131 = vadd.f32 %v1128, 1.0
  %v1132 = vmul.f32 %v1129, 0.5
  %v1133 = vmul.f32 %v1130, 0.5
  %v1134 = vmul.f32 %v1131, 0.5
  %v1135 = vtanh.pop %v1122
  %v1136 = vmul.f32 %v1133, %v1058
  %v1137 = vmul.f32 %v1132, %v1135
  %v1138 = vadd.f32 %v1136, %v1137
  %v1139 = vtanh.pop %v1138
  %v1140 = vmul.f32 %v1134, %v1139
  %s1141 = sadd.s32 %s430, 5
  %v1142 = vstv %s1141
  %vm1143 = vcmp.lt.s32.totalorder %v1142, %v429
  %v1144 = vsel %vm1143, %v1140, %v1057
  %v1145 = vsel %vm1143, %v1138, %v1058
  %s1146 = smul.u32 6, 4
  %s1147 = smul.addr %s1146, 8
  %s1148 = scalar_lea.vmem [#allocation2], %s1147
  %v1149 = vld [vmem:[%s1148] sm:$0xff]
  %v1150 = vld [vmem:[%s1148 + $0x8] sm:$0xff]
  %v1151 = vld [vmem:[%s1148 + $0x10] sm:$0xff]
  %v1152 = vld [vmem:[%s1148 + $0x18] sm:$0xff]
  %v1153 = vpack.c.bf16 %v1144, %v1144
  %1154 = vmatpush.bf16.msra.mxu0 %v597
  %1155 = vmatpush.bf16.msra.mxu0 %v593
  %1156 = vmatpush.bf16.msra.mxu0 %v589
  %1157 = vmatpush.bf16.msra.mxu0 %v585
  %1158 = vmatpush.bf16.msra.mxu0 %v581
  %1159 = vmatpush.bf16.msra.mxu0 %v577
  %1160 = vmatpush.bf16.msra.mxu0 %v573
  %1161 = vmatpush.bf16.msra.mxu0 %v569
  %1162 = vmatmul.bf16.gmra.mxu0 %v1153
  %v1163 = vpop.f32.mrf.mxu0
  %v1164 = vadd.f32 0.0, %v1163
  %v1165 = vpop.f32.mrf.mxu0
  %1166 = vdwg.mxu0
  %1167 = vmatpush.bf16.msra.mxu0 %v598
  %1168 = vmatpush.bf16.msra.mxu0 %v594
  %1169 = vmatpush.bf16.msra.mxu0 %v590
  %1170 = vmatpush.bf16.msra.mxu0 %v586
  %1171 = vmatpush.bf16.msra.mxu0 %v582
  %1172 = vmatpush.bf16.msra.mxu0 %v578
  %1173 = vmatpush.bf16.msra.mxu0 %v574
  %1174 = vmatpush.bf16.msra.mxu0 %v570
  %1175 = vmatmul.bf16.gmra.mxu0 %v1153
  %v1176 = vpop.f32.mrf.mxu0
  %v1177 = vadd.f32 0.0, %v1176
  %v1178 = vpop.f32.mrf.mxu0
  %1179 = vdwg.mxu0
  %1180 = vmatpush.bf16.msra.mxu0 %v599
  %1181 = vmatpush.bf16.msra.mxu0 %v595
  %1182 = vmatpush.bf16.msra.mxu0 %v591
  %1183 = vmatpush.bf16.msra.mxu0 %v587
  %1184 = vmatpush.bf16.msra.mxu0 %v583
  %1185 = vmatpush.bf16.msra.mxu0 %v579
  %1186 = vmatpush.bf16.msra.mxu0 %v575
  %1187 = vmatpush.bf16.msra.mxu0 %v571
  %1188 = vmatmul.bf16.gmra.mxu0 %v1153
  %v1189 = vpop.f32.mrf.mxu0
  %v1190 = vadd.f32 0.0, %v1189
  %v1191 = vpop.f32.mrf.mxu0
  %1192 = vdwg.mxu0
  %1193 = vmatpush.bf16.msra.mxu0 %v600
  %1194 = vmatpush.bf16.msra.mxu0 %v596
  %1195 = vmatpush.bf16.msra.mxu0 %v592
  %1196 = vmatpush.bf16.msra.mxu0 %v588
  %1197 = vmatpush.bf16.msra.mxu0 %v584
  %1198 = vmatpush.bf16.msra.mxu0 %v580
  %1199 = vmatpush.bf16.msra.mxu0 %v576
  %1200 = vmatpush.bf16.msra.mxu0 %v572
  %1201 = vmatmul.bf16.gmra.mxu0 %v1153
  %v1202 = vpop.f32.mrf.mxu0
  %v1203 = vadd.f32 0.0, %v1202
  %v1204 = vpop.f32.mrf.mxu0
  %1205 = vdwg.mxu0
  %v1206 = vadd.f32 %v1149, %v1164
  %v1207 = vadd.f32 %v1150, %v1177
  %v1208 = vadd.f32 %v1151, %v1190
  %v1209 = vadd.f32 %v1152, %v1203
  %v1210 = vmul.f32 %v1206, 0.5
  %v1211 = vmul.f32 %v1207, 0.5
  %v1212 = vmul.f32 %v1208, 0.5
  %v1213 = vtanh.pop %v1210
  %v1214 = vtanh.pop %v1211
  %v1215 = vtanh.pop %v1212
  %v1216 = vadd.f32 %v1213, 1.0
  %v1217 = vadd.f32 %v1214, 1.0
  %v1218 = vadd.f32 %v1215, 1.0
  %v1219 = vmul.f32 %v1216, 0.5
  %v1220 = vmul.f32 %v1217, 0.5
  %v1221 = vmul.f32 %v1218, 0.5
  %v1222 = vtanh.pop %v1209
  %v1223 = vmul.f32 %v1220, %v1145
  %v1224 = vmul.f32 %v1219, %v1222
  %v1225 = vadd.f32 %v1223, %v1224
  %v1226 = vtanh.pop %v1225
  %v1227 = vmul.f32 %v1221, %v1226
  %s1228 = sadd.s32 %s430, 6
  %v1229 = vstv %s1228
  %vm1230 = vcmp.lt.s32.totalorder %v1229, %v429
  %v1231 = vsel %vm1230, %v1227, %v1144
  %v1232 = vsel %vm1230, %v1225, %v1145
  %s1233 = smul.u32 7, 4
  %s1234 = smul.addr %s1233, 8
  %s1235 = scalar_lea.vmem [#allocation2], %s1234
  %v1236 = vld [vmem:[%s1235] sm:$0xff]
  %v1237 = vld [vmem:[%s1235 + $0x8] sm:$0xff]
  %v1238 = vld [vmem:[%s1235 + $0x10] sm:$0xff]
  %v1239 = vld [vmem:[%s1235 + $0x18] sm:$0xff]
  %v1240 = vpack.c.bf16 %v1231, %v1231
  %1241 = vmatpush.bf16.msra.mxu0 %v597
  %1242 = vmatpush.bf16.msra.mxu0 %v593
  %1243 = vmatpush.bf16.msra.mxu0 %v589
  %1244 = vmatpush.bf16.msra.mxu0 %v585
  %1245 = vmatpush.bf16.msra.mxu0 %v581
  %1246 = vmatpush.bf16.msra.mxu0 %v577
  %1247 = vmatpush.bf16.msra.mxu0 %v573
  %1248 = vmatpush.bf16.msra.mxu0 %v569
  %1249 = vmatmul.bf16.gmra.mxu0 %v1240
  %v1250 = vpop.f32.mrf.mxu0
  %v1251 = vadd.f32 0.0, %v1250
  %v1252 = vpop.f32.mrf.mxu0
  %1253 = vdwg.mxu0
  %1254 = vmatpush.bf16.msra.mxu0 %v598
  %1255 = vmatpush.bf16.msra.mxu0 %v594
  %1256 = vmatpush.bf16.msra.mxu0 %v590
  %1257 = vmatpush.bf16.msra.mxu0 %v586
  %1258 = vmatpush.bf16.msra.mxu0 %v582
  %1259 = vmatpush.bf16.msra.mxu0 %v578
  %1260 = vmatpush.bf16.msra.mxu0 %v574
  %1261 = vmatpush.bf16.msra.mxu0 %v570
  %1262 = vmatmul.bf16.gmra.mxu0 %v1240
  %v1263 = vpop.f32.mrf.mxu0
  %v1264 = vadd.f32 0.0, %v1263
  %v1265 = vpop.f32.mrf.mxu0
  %1266 = vdwg.mxu0
  %1267 = vmatpush.bf16.msra.mxu0 %v599
  %1268 = vmatpush.bf16.msra.mxu0 %v595
  %1269 = vmatpush.bf16.msra.mxu0 %v591
  %1270 = vmatpush.bf16.msra.mxu0 %v587
  %1271 = vmatpush.bf16.msra.mxu0 %v583
  %1272 = vmatpush.bf16.msra.mxu0 %v579
  %1273 = vmatpush.bf16.msra.mxu0 %v575
  %1274 = vmatpush.bf16.msra.mxu0 %v571
  %1275 = vmatmul.bf16.gmra.mxu0 %v1240
  %v1276 = vpop.f32.mrf.mxu0
  %v1277 = vadd.f32 0.0, %v1276
  %v1278 = vpop.f32.mrf.mxu0
  %1279 = vdwg.mxu0
  %1280 = vmatpush.bf16.msra.mxu0 %v600
  %1281 = vmatpush.bf16.msra.mxu0 %v596
  %1282 = vmatpush.bf16.msra.mxu0 %v592
  %1283 = vmatpush.bf16.msra.mxu0 %v588
  %1284 = vmatpush.bf16.msra.mxu0 %v584
  %1285 = vmatpush.bf16.msra.mxu0 %v580
  %1286 = vmatpush.bf16.msra.mxu0 %v576
  %1287 = vmatpush.bf16.msra.mxu0 %v572
  %1288 = vmatmul.bf16.gmra.mxu0 %v1240
  %v1289 = vpop.f32.mrf.mxu0
  %v1290 = vadd.f32 0.0, %v1289
  %v1291 = vpop.f32.mrf.mxu0
  %1292 = vdwg.mxu0
  %v1293 = vadd.f32 %v1236, %v1251
  %v1294 = vadd.f32 %v1237, %v1264
  %v1295 = vadd.f32 %v1238, %v1277
  %v1296 = vadd.f32 %v1239, %v1290
  %v1297 = vmul.f32 %v1293, 0.5
  %v1298 = vmul.f32 %v1294, 0.5
  %v1299 = vmul.f32 %v1295, 0.5
  %v1300 = vtanh.pop %v1297
  %v1301 = vtanh.pop %v1298
  %v1302 = vtanh.pop %v1299
  %v1303 = vadd.f32 %v1300, 1.0
  %v1304 = vadd.f32 %v1301, 1.0
  %v1305 = vadd.f32 %v1302, 1.0
  %v1306 = vmul.f32 %v1303, 0.5
  %v1307 = vmul.f32 %v1304, 0.5
  %v1308 = vmul.f32 %v1305, 0.5
  %v1309 = vtanh.pop %v1296
  %v1310 = vmul.f32 %v1307, %v1232
  %v1311 = vmul.f32 %v1306, %v1309
  %v1312 = vadd.f32 %v1310, %v1311
  %v1313 = vtanh.pop %v1312
  %v1314 = vmul.f32 %v1308, %v1313
  %s1315 = sadd.s32 %s430, 7
  %v1316 = vstv %s1315
  %vm1317 = vcmp.lt.s32.totalorder %v1316, %v429
  %v1318 = vsel %vm1317, %v1314, %v1231
  %v1319 = vsel %vm1317, %v1312, %v1232
  %1320 = vst [vmem:[#allocation3] sm:$0xff] %v1318
  %1321 = vst [vmem:[#allocation4] sm:$0xff] %v1319
  // Predicated region
  $region54: #{sentiment_forward.1} parent=0 // pred_check
    %p1322 = pneg %p41
  $region55: #{sentiment_forward.1} parent=0 // pred_check_branch
    %1324 = sbr.rel (%p1322) target = $region57
  $region56: #{sentiment_forward.1} parent=0 // pred_region
    %v1325 = vld [vmem:[%s5] sm:$0xff]
    %v1326 = vmul.f32 %v1318, %v1325
    %1327 = vadd.xlane.f32.xlu0 %v1326
    %v1328 = vpop.xlane.xlu0 %1327
    %v1329 = vmul.f32 %v1328, 0.03125
    %v1330 = vmul.f32 %v1326, %v1326
    %1331 = vadd.xlane.f32.xlu0 %v1330
    %v1332 = vpop.xlane.xlu0 %1331
    %v1333 = vmul.f32 %v1332, 0.03125
    %v1334 = vmul.f32 %v1329, %v1329
    %v1335 = vsub.f32 %v1333, %v1334
    %v1336 = vsub.f32 %v1326, %v1329
    %v1337 = vadd.f32 %v1335, 1e-05
    %v1338 = vrsqrt.pop %v1337
    %v1339 = vmul.f32 %v1338, %v1337
    %v1340 = vmul.f32 %v1339, %v1338
    %v1341 = vmul.f32 0.5, %v1340
    %v1342 = vsub.f32 1.5, %v1341
    %v1343 = vmul.f32 %v1338, %v1342
    %vm1344 = vweird.f32 %v1337
    %vm1345 = vweird.f32 %v1338
    %vm1346 = vmor %vm1344, %vm1345
    %v1347 = vsel %vm1346, %v1338, %v1343
    %v1348 = vmul.f32 %v1336, %v1347
    %v1349 = vld [vmem:[%s6] sm:$0x1]
    %v1351 = vperm.slane %v1349, 0
    %v1353 = vmul.f32 %v1348, %v1351
    %v1354 = vld [vmem:[%s7] sm:$0x1]
    %v1356 = vperm.slane %v1354, 0
    %v1358 = vadd.f32 %v1353, %v1356
    %v1359 = vpack.c.bf16 %v1358, %v1358
    %v1360 = vld [vmem:[%s8] sm:$0xf]
    %v1361 = vld [vmem:[%s8 + $0x4] sm:$0xf]
    %v1362 = vld [vmem:[%s8 + $0x8] sm:$0xf]
    %v1363 = vld [vmem:[%s8 + $0xc] sm:$0xf]
    %v1364 = vld [vmem:[%s8 + $0x10] sm:$0xf]
    %v1365 = vld [vmem:[%s8 + $0x14] sm:$0xf]
    %v1366 = vld [vmem:[%s8 + $0x18] sm:$0xf]
    %v1367 = vld [vmem:[%s8 + $0x1c] sm:$0xf]
    %v1368 = vld [vmem:[%s8 + $0x20] sm:$0xf]
    %v1369 = vld [vmem:[%s8 + $0x24] sm:$0xf]
    %v1370 = vld [vmem:[%s8 + $0x28] sm:$0xf]
    %v1371 = vld [vmem:[%s8 + $0x2c] sm:$0xf]
    %v1372 = vld [vmem:[%s8 + $0x30] sm:$0xf]
    %v1373 = vld [vmem:[%s8 + $0x34] sm:$0xf]
    %v1374 = vld [vmem:[%s8 + $0x38] sm:$0xf]
    %v1375 = vld [vmem:[%s8 + $0x3c] sm:$0xf]
    %v1376 = vld [vmem:[%s9] sm:$0x1]
    %v1378 = vperm.slane %v1376, 0
    %v1396 = vunpack.c.l.b16 %v1360
    %v1397 = vunpack.c.l.b16 %v1361
    %v1398 = vunpack.c.l.b16 %v1362
    %v1399 = vunpack.c.l.b16 %v1363
    %v1400 = vunpack.c.l.b16 %v1364
    %v1401 = vunpack.c.l.b16 %v1365
    %v1402 = vunpack.c.l.b16 %v1366
    %v1403 = vunpack.c.l.b16 %v1367
    %v1404 = vunpack.c.l.b16 %v1368
    %v1405 = vunpack.c.l.b16 %v1369
    %v1406 = vunpack.c.l.b16 %v1370
    %v1407 = vunpack.c.l.b16 %v1371
    %v1408 = vunpack.c.l.b16 %v1372
    %v1409 = vunpack.c.l.b16 %v1373
    %v1410 = vunpack.c.l.b16 %v1374
    %v1411 = vunpack.c.l.b16 %v1375
    %v1412 = vpack.c.b16 %v1397, %v1396
    %v1413 = vpack.c.b16 %v1399, %v1398
    %v1414 = vpack.c.b16 %v1401, %v1400
    %v1415 = vpack.c.b16 %v1403, %v1402
    %v1416 = vpack.c.b16 %v1405, %v1404
    %v1417 = vpack.c.b16 %v1407, %v1406
    %v1418 = vpack.c.b16 %v1409, %v1408
    %v1419 = vpack.c.b16 %v1411, %v1410
    %1428 = vmatpush.bf16.msra.mxu0 %v1419
    %1429 = vmatpush.bf16.msra.mxu0 %v1418
    %1430 = vmatpush.bf16.msra.mxu0 %v1417
    %1431 = vmatpush.bf16.msra.mxu0 %v1416
    %1432 = vmatpush.bf16.msra.mxu0 %v1415
    %1433 = vmatpush.bf16.msra.mxu0 %v1414
    %1434 = vmatpush.bf16.msra.mxu0 %v1413
    %1435 = vmatpush.bf16.msra.mxu0 %v1412
    %1436 = vmatmul.bf16.gmra.mxu0 %v1359
    %v1437 = vpop.f32.mrf.mxu0
    %v1438 = vadd.f32 %v1378, %v1437
    %v1439 = vpop.f32.mrf.mxu0
    %1440 = vdwg.mxu0
    %v1441 = vmax.f32 %v1438, 0.0
    %v1442 = vpack.c.bf16 %v1441, %v1441
    %v1443 = vld [vmem:[%s10] sm:$0xf]
    %v1444 = vld [vmem:[%s10 + $0x4] sm:$0xf]
    %v1445 = vld [vmem:[%s10 + $0x8] sm:$0xf]
    %v1446 = vld [vmem:[%s10 + $0xc] sm:$0xf]
    %v1447 = vld [vmem:[%s10 + $0x10] sm:$0xf]
    %v1448 = vld [vmem:[%s10 + $0x14] sm:$0xf]
    %v1449 = vld [vmem:[%s10 + $0x18] sm:$0xf]
    %v1450 = vld [vmem:[%s10 + $0x1c] sm:$0xf]
    %v1451 = vld [vmem:[%s10 + $0x20] sm:$0xf]
    %v1452 = vld [vmem:[%s10 + $0x24] sm:$0xf]
    %v1453 = vld [vmem:[%s10 + $0x28] sm:$0xf]
    %v1454 = vld [vmem:[%s10 + $0x2c] sm:$0xf]
    %v1455 = vld [vmem:[%s10 + $0x30] sm:$0xf]
    %v1456 = vld [vmem:[%s10 + $0x34] sm:$0xf]
    %v1457 = vld [vmem:[%s10 + $0x38] sm:$0xf]
    %v1458 = vld [vmem:[%s10 + $0x3c] sm:$0xf]
    %v1459 = vld [vmem:[%s11] sm:$0x1]
    %v1461 = vperm.slane %v1459, 0
    %v1479 = vunpack.c.l.b16 %v1443
    %v1480 = vunpack.c.l.b16 %v1444
    %v1481 = vunpack.c.l.b16 %v1445
    %v1482 = vunpack.c.l.b16 %v1446
    %v1483 = vunpack.c.l.b16 %v1447
    %v1484 = vunpack.c.l.b16 %v1448
    %v1485 = vunpack.c.l.b16 %v1449
    %v1486 = vunpack.c.l.b16 %v1450
    %v1487 = vunpack.c.l.b16 %v1451
    %v1488 = vunpack.c.l.b16 %v1452
    %v1489 = vunpack.c.l.b16 %v1453
    %v1490 = vunpack.c.l.b16 %v1454
    %v1491 = vunpack.c.l.b16 %v1455
    %v1492 = vunpack.c.l.b16 %v1456
    %v1493 = vunpack.c.l.b16 %v1457
    %v1494 = vunpack.c.l.b16 %v1458
    %v1495 = vpack.c.b16 %v1480, %v1479
    %v1496 = vpack.c.b16 %v1482, %v1481
    %v1497 = vpack.c.b16 %v1484, %v1483
    %v1498 = vpack.c.b16 %v1486, %v1485
    %v1499 = vpack.c.b16 %v1488, %v1487
    %v1500 = vpack.c.b16 %v1490, %v1489
    %v1501 = vpack.c.b16 %v1492, %v1491
    %v1502 = vpack.c.b16 %v1494, %v1493
    %1511 = vmatpush.bf16.msra.mxu0 %v1502
    %1512 = vmatpush.bf16.msra.mxu0 %v1501
    %1513 = vmatpush.bf16.msra.mxu0 %v1500
    %1514 = vmatpush.bf16.msra.mxu0 %v1499
    %1515 = vmatpush.bf16.msra.mxu0 %v1498
    %1516 = vmatpush.bf16.msra.mxu0 %v1497
    %1517 = vmatpush.bf16.msra.mxu0 %v1496
    %1518 = vmatpush.bf16.msra.mxu0 %v1495
    %1519 = vmatmul.bf16.gmra.mxu0 %v1442
    %v1520 = vpop.f32.mrf.mxu0
    %v1521 = vadd.f32 %v1461, %v1520
    %v1522 = vpop.f32.mrf.mxu0
    %1523 = vdwg.mxu0
    %1524 = vst [vmem:[%s12] sm:$0xff] %v1521
  $region57: #{sentiment_forward.1} parent=0 // pred_fallthru
    _
  // Predicated region
  $region58: #{sentiment_forward.1} parent=0 // pred_check
    _
  $region59: #{sentiment_forward.1} parent=0 // pred_check_branch
    %1526 = sbr.rel (0) target = $region61
  $region60: #{sentiment_forward.1} parent=0 // pred_region
    _
  $region61: #{sentiment_forward.1} parent=0 // pred_fallthru
    _
  // Predicated region
  $region62: #{sentiment_forward.1} parent=0 // pred_check
    _
  $region63: #{sentiment_forward.1} parent=0 // pred_check_branch
    %1528 = sbr.rel (0) target = $region65
  $region64: #{sentiment_forward.1} parent=0 // pred_region
    _
  $region65: #{sentiment_forward.1} parent=0 // pred_fallthru
    _

</llo_original>
